<compile_context>
chip_gen: v7x
topology: tpu7x:2x2x1
jax: 0.10.0
libtpu: 0.0.40
codegen_flags: <defaults>
</compile_context>

<pallas_src>
import jax
import jax.numpy as jnp
from jax.experimental import pallas as pl
from jax.experimental.pallas import tpu as pltpu


def _mlp_kernel(x_ref, w1t_ref, b1_ref, w3_ref, b3_ref, o_ref):
    # fc1 on the MXU: (tile_b, D) @ (D, H) -> (tile_b, H); batch on sublanes.
    h = jnp.dot(x_ref[...], w1t_ref[...], preferred_element_type=jnp.float32)
    # bias + ReLU.  NOTE: fc2/relu1 are defined but unused in the PyTorch
    # forward (x = relu2(fc1(x)) -> fc3 -> sigmoid); omitting them is intentional.
    h = jnp.maximum(h + b1_ref[...], 0.0)
    # fc3 as VPU multiply + lane-axis (XLU) reduce — keep it off the MXU.
    z = jnp.sum(h * w3_ref[...], axis=1, keepdims=True) + b3_ref[...]   # (tile_b, 1)
    # Exact sigmoid: exp on the EUP; the divide only touches a (tile_b, 1) slab.
    o_ref[...] = 1.0 / (1.0 + jnp.exp(-z))


_MAX_TILE_B = 32768  # single grid step up to 32K boards (~2.4 MB double-buffered VMEM)


def tictactoe_forward(x, w1, b1, w3, b3):
    """Forward pass of TicTacToeModel: sigmoid(fc3(relu(fc1(x)))).

    x : (B, D) f32 boards, native layout (no pad/transpose pass over x).
    Params in PyTorch layout: w1 = fc1.weight (64, D), b1 = fc1.bias (64,),
                              w3 = fc3.weight (1, 64), b3 = fc3.bias (1,).
    Returns (B, 1) f32 win probabilities.
    """
    B, D = x.shape
    H = w1.shape[0]

    # One grid step for B <= 32K (block = full batch dim, always a legal block
    # shape); only tile — and shard across TensorCores — for huge batches.
    tile_b = B if B <= _MAX_TILE_B else _MAX_TILE_B
    num_tiles = pl.cdiv(B, tile_b)

    # Tiny, non-batch-scaled layout plumbing (hundreds of floats, effectively free).
    w1t = w1.T                   # (D, H)
    b1r = b1.reshape(1, H)
    w3r = w3.reshape(1, H)
    b3r = b3.reshape(1, 1)

    cost = pl.CostEstimate(
        flops=int(2 * B * D * H + 4 * B * H + 4 * B),
        transcendentals=int(B),
        bytes_accessed=int(4 * (B * D + D * H + 2 * H + 1 + B)),
    )

    out = pl.pallas_call(
        _mlp_kernel,
        out_shape=jax.ShapeDtypeStruct((B, 1), jnp.float32),
        grid=(num_tiles,),
        in_specs=[
            pl.BlockSpec((tile_b, D), lambda i: (i, 0)),   # x streamed in native layout
            pl.BlockSpec((D, H), lambda i: (0, 0)),        # weights stay VMEM-resident
            pl.BlockSpec((1, H), lambda i: (0, 0)),
            pl.BlockSpec((1, H), lambda i: (0, 0)),
            pl.BlockSpec((1, 1), lambda i: (0, 0)),
        ],
        out_specs=pl.BlockSpec((tile_b, 1), lambda i: (i, 0)),
        compiler_params=pltpu.CompilerParams(
            # Only shard the batch axis across v7x's 2 TCs when each core gets a
            # large (>=32K-board) tile; microsecond-scale launches stay on one TC.
            dimension_semantics=("parallel",) if num_tiles > 1 else ("arbitrary",),
        ),
        cost_estimate=cost,
    )(x, w1t, b1r, w3r, b3r)

    return out


def reference_forward(x, w1, b1, w3, b3):
    h = jnp.maximum(x @ w1.T + b1, 0.0)
    return jax.nn.sigmoid(h @ w3.T + b3)


if __name__ == "__main__":
    # TicTacToe board: 9 cells -> input_size = 9; hidden = 64 per the module.
    B, D, H = 1024, 9, 64
    key = jax.random.PRNGKey(0)
    kx, k1w, k1b, k3w, k3b = jax.random.split(key, 5)

    x = jax.random.normal(kx, (B, D), dtype=jnp.float32)

    # Parameters in PyTorch layout: fc1.weight (64, 9), fc1.bias (64,),
    # fc3.weight (1, 64), fc3.bias (1,).
    w1 = jax.random.normal(k1w, (H, D), dtype=jnp.float32) * 0.1
    b1 = jax.random.normal(k1b, (H,), dtype=jnp.float32) * 0.1
    w3 = jax.random.normal(k3w, (1, H), dtype=jnp.float32) * 0.1
    b3 = jax.random.normal(k3b, (1,), dtype=jnp.float32) * 0.1

    y = jax.block_until_ready(tictactoe_forward(x, w1, b1, w3, b3))
    y_ref = reference_forward(x, w1, b1, w3, b3)
    assert y.shape == (B, 1)
    assert jnp.allclose(y, y_ref, atol=2e-3, rtol=2e-3), "mismatch vs JAX reference"

    # Non-multiple-of-8 batch: block shape equals the full array dim (legal),
    # output stores are exact, no padding pass needed.
    xs = x[:10]
    ys = jax.block_until_ready(tictactoe_forward(xs, w1, b1, w3, b3))
    ys_ref = reference_forward(xs, w1, b1, w3, b3)
    assert ys.shape == (10, 1)
    assert jnp.allclose(ys, ys_ref, atol=2e-3, rtol=2e-3), "mismatch (small batch)"

    print("KERNEL_OK")
</pallas_src>

<mosaic_0001>
module attributes {stable_mosaic.version = 11 : i64} {
  func.func @_mlp_kernel(%arg0: i32, %arg1: memref<1024x9xf32, #tpu.memory_space<vmem>>, %arg2: memref<9x64xf32, #tpu.memory_space<vmem>>, %arg3: memref<1x64xf32, #tpu.memory_space<vmem>>, %arg4: memref<1x64xf32, #tpu.memory_space<vmem>>, %arg5: memref<1x1xf32, #tpu.memory_space<vmem>>, %arg6: memref<1024x1xf32, #tpu.memory_space<vmem>>) attributes {dimension_semantics = [#tpu.dimension_semantics<arbitrary>], iteration_bounds = array<i64: 1>, scalar_prefetch = 0 : i64, scratch_operands = 0 : i64, tpu.core_type = #tpu.core_type<tc>, window_params = [{transform_indices = @transform_0, window_bounds = array<i64: 1024, 9>}, {pipeline_mode = #tpu.pipeline_mode<synchronous>, transform_indices = @transform_1, window_bounds = array<i64: 9, 64>}, {pipeline_mode = #tpu.pipeline_mode<synchronous>, transform_indices = @transform_2, window_bounds = array<i64: 1, 64>}, {pipeline_mode = #tpu.pipeline_mode<synchronous>, transform_indices = @transform_3, window_bounds = array<i64: 1, 64>}, {pipeline_mode = #tpu.pipeline_mode<synchronous>, transform_indices = @transform_4, window_bounds = array<i64: 1, 1>}, {transform_indices = @transform_5, window_bounds = array<i64: 1024, 1>}]} {
    %c0 = arith.constant 0 : index
    %c0_0 = arith.constant 0 : index
    %0 = vector.load %arg1[%c0, %c0_0] : memref<1024x9xf32, #tpu.memory_space<vmem>>, vector<1024x9xf32>
    %c0_1 = arith.constant 0 : index
    %c0_2 = arith.constant 0 : index
    %1 = vector.load %arg2[%c0_1, %c0_2] : memref<9x64xf32, #tpu.memory_space<vmem>>, vector<9x64xf32>
    %cst = arith.constant dense<0.000000e+00> : vector<1024x64xf32>
    %2 = tpu.matmul %0, %1, %cst {dimension_numbers = #tpu.dot_dimension_numbers<[1], [0], [0], [1], [0, 0, 1, 1], [], []>} : vector<1024x9xf32>, vector<9x64xf32>, vector<1024x64xf32> -> vector<1024x64xf32>
    %c0_3 = arith.constant 0 : index
    %c0_4 = arith.constant 0 : index
    %3 = vector.load %arg3[%c0_3, %c0_4] : memref<1x64xf32, #tpu.memory_space<vmem>>, vector<1x64xf32>
    %4 = vector.broadcast %3 : vector<1x64xf32> to vector<1024x64xf32>
    %5 = arith.addf %2, %4 : vector<1024x64xf32>
    %cst_5 = arith.constant 0.000000e+00 : f32
    %6 = vector.broadcast %cst_5 : f32 to vector<1024x64xf32>
    %7 = arith.maximumf %5, %6 : vector<1024x64xf32>
    %c0_6 = arith.constant 0 : index
    %c0_7 = arith.constant 0 : index
    %8 = vector.load %arg4[%c0_6, %c0_7] : memref<1x64xf32, #tpu.memory_space<vmem>>, vector<1x64xf32>
    %9 = vector.broadcast %8 : vector<1x64xf32> to vector<1024x64xf32>
    %10 = arith.mulf %7, %9 : vector<1024x64xf32>
    %cst_8 = arith.constant dense<0.000000e+00> : vector<1024xf32>
    %11 = vector.multi_reduction <add>, %10, %cst_8 [1] : vector<1024x64xf32> to vector<1024xf32>
    %12 = vector.shape_cast %11 : vector<1024xf32> to vector<1024x1xf32>
    %c0_9 = arith.constant 0 : index
    %c0_10 = arith.constant 0 : index
    %13 = vector.load %arg5[%c0_9, %c0_10] : memref<1x1xf32, #tpu.memory_space<vmem>>, vector<1x1xf32>
    %14 = vector.broadcast %13 : vector<1x1xf32> to vector<1024x1xf32>
    %15 = arith.addf %12, %14 : vector<1024x1xf32>
    %cst_11 = arith.constant 0.000000e+00 : f32
    %16 = vector.broadcast %cst_11 : f32 to vector<1024x1xf32>
    %17 = arith.subf %16, %15 : vector<1024x1xf32>
    %18 = math.exp %17 : vector<1024x1xf32>
    %cst_12 = arith.constant 1.000000e+00 : f32
    %19 = vector.broadcast %cst_12 : f32 to vector<1024x1xf32>
    %20 = arith.addf %19, %18 : vector<1024x1xf32>
    %cst_13 = arith.constant 1.000000e+00 : f32
    %21 = vector.broadcast %cst_13 : f32 to vector<1024x1xf32>
    %22 = arith.divf %21, %20 : vector<1024x1xf32>
    %c0_14 = arith.constant 0 : index
    %c0_15 = arith.constant 0 : index
    %23 = vector.load %arg6[%c0_14, %c0_15] : memref<1024x1xf32, #tpu.memory_space<vmem>>, vector<1024x1xf32>
    tpu.vector_store %arg6[%c0_14, %c0_15], %22 {strides = array<i32>} : memref<1024x1xf32, #tpu.memory_space<vmem>>, vector<1024x1xf32>,
    return
  }
  func.func @transform_0(%arg0: i32) -> (i32, i32) {
    %c0_i32 = arith.constant 0 : i32
    %c0_i32_0 = arith.constant 0 : i32
    return %arg0, %c0_i32 : i32, i32
  }
  func.func @transform_1(%arg0: i32) -> (i32, i32) {
    %c0_i32 = arith.constant 0 : i32
    %c0_i32_0 = arith.constant 0 : i32
    %c0_i32_1 = arith.constant 0 : i32
    return %c0_i32, %c0_i32_0 : i32, i32
  }
  func.func @transform_2(%arg0: i32) -> (i32, i32) {
    %c0_i32 = arith.constant 0 : i32
    %c0_i32_0 = arith.constant 0 : i32
    %c0_i32_1 = arith.constant 0 : i32
    return %c0_i32, %c0_i32_0 : i32, i32
  }
  func.func @transform_3(%arg0: i32) -> (i32, i32) {
    %c0_i32 = arith.constant 0 : i32
    %c0_i32_0 = arith.constant 0 : i32
    %c0_i32_1 = arith.constant 0 : i32
    return %c0_i32, %c0_i32_0 : i32, i32
  }
  func.func @transform_4(%arg0: i32) -> (i32, i32) {
    %c0_i32 = arith.constant 0 : i32
    %c0_i32_0 = arith.constant 0 : i32
    %c0_i32_1 = arith.constant 0 : i32
    return %c0_i32, %c0_i32_0 : i32, i32
  }
  func.func @transform_5(%arg0: i32) -> (i32, i32) {
    %c0_i32 = arith.constant 0 : i32
    %c0_i32_0 = arith.constant 0 : i32
    return %arg0, %c0_i32 : i32, i32
  }
}

</mosaic_0001>

<llo_original>
// kernel: tpu_custom_call.1
$region0: #{tpu_custom_call.1}
  #allocation0 [shape = 'u32[]', space=smem, size = 0x4, offset = 0x4, fixed_abs, tag = 'smem constant byte address 0x4 - core index']
  #allocation1 [shape = 'u32[144,128]{1,0:T(1,128)}', space=vmem, size = 0x12000, scoped, tag = 'internal scratch']
  #allocation2 [shape = 'f32[1,1]{1,0:T(1,128)S(1)}', space=vmem, size = 0x200, scoped, tag = 'scoped memory for tpu_custom_call.1']
  %s0 = inlined_call_operand.vmem [shape: f32[1024,9], index: 0, kind: input, shape index: {}]
  %s1 = inlined_call_operand.vmem [shape: f32[9,64], index: 1, kind: input, shape index: {}]
  %s2 = inlined_call_operand.vmem [shape: f32[1,64], index: 2, kind: input, shape index: {}]
  %s3 = inlined_call_operand.vmem [shape: f32[1,64], index: 3, kind: input, shape index: {}]
  %s4 = inlined_call_operand.<no memory space> [shape: f32[1,1], index: 4, kind: input, shape index: {}]
  %s5 = inlined_call_operand.vmem [shape: f32[1024,1], index: 5, kind: output, shape index: {}]
  %s6 = sld [smem:[#allocation0]]
  $region30: #{tpu_custom_call.1} parent=0
    _
  %s8 = ssub.s32 1, %s6
  %s9 = scalar_select 0, %s8, %s6
  %v10 = vstv %s4
  %11 = vst [vmem:[#allocation2] sm:$0x1] %v10
  // Predicated region
  $region2: #{tpu_custom_call.1} parent=0 // pred_check
    _
  $region3: #{tpu_custom_call.1} parent=0 // pred_check_branch
    %13 = sbr.rel (0) target = $region5
  $region4: #{tpu_custom_call.1} parent=0 // pred_region
    _
  $region5: #{tpu_custom_call.1} parent=0 // pred_fallthru
    _
  // Predicated region
  $region6: #{tpu_custom_call.1} parent=0 // pred_check
    _
  $region7: #{tpu_custom_call.1} parent=0 // pred_check_branch
    %15 = sbr.rel (0) target = $region9
  $region8: #{tpu_custom_call.1} parent=0 // pred_region
    _
  $region9: #{tpu_custom_call.1} parent=0 // pred_fallthru
    _
  // Predicated region
  $region10: #{tpu_custom_call.1} parent=0 // pred_check
    _
  $region11: #{tpu_custom_call.1} parent=0 // pred_check_branch
    %17 = sbr.rel (0) target = $region13
  $region12: #{tpu_custom_call.1} parent=0 // pred_region
    _
  $region13: #{tpu_custom_call.1} parent=0 // pred_fallthru
    _
  // Predicated region
  $region14: #{tpu_custom_call.1} parent=0 // pred_check
    _
  $region15: #{tpu_custom_call.1} parent=0 // pred_check_branch
    %19 = sbr.rel (0) target = $region17
  $region16: #{tpu_custom_call.1} parent=0 // pred_region
    _
  $region17: #{tpu_custom_call.1} parent=0 // pred_fallthru
    _
  // Predicated region
  $region18: #{tpu_custom_call.1} parent=0 // pred_check
    _
  $region19: #{tpu_custom_call.1} parent=0 // pred_check_branch
    %21 = sbr.rel (0) target = $region21
  $region20: #{tpu_custom_call.1} parent=0 // pred_region
    _
  $region21: #{tpu_custom_call.1} parent=0 // pred_fallthru
    _
  %v22 = vld [vmem:[%s0] sm:$0xff]
  %v23 = vld [vmem:[%s0 + $0x8] sm:$0xff]
  %v24 = vld [vmem:[%s0 + $0x10] sm:$0xff]
  %v25 = vld [vmem:[%s0 + $0x18] sm:$0xff]
  %v26 = vld [vmem:[%s0 + $0x20] sm:$0xff]
  %v27 = vld [vmem:[%s0 + $0x28] sm:$0xff]
  %v28 = vld [vmem:[%s0 + $0x30] sm:$0xff]
  %v29 = vld [vmem:[%s0 + $0x38] sm:$0xff]
  %v30 = vld [vmem:[%s0 + $0x40] sm:$0xff]
  %v31 = vld [vmem:[%s0 + $0x48] sm:$0xff]
  %v32 = vld [vmem:[%s0 + $0x50] sm:$0xff]
  %v33 = vld [vmem:[%s0 + $0x58] sm:$0xff]
  %v34 = vld [vmem:[%s0 + $0x60] sm:$0xff]
  %v35 = vld [vmem:[%s0 + $0x68] sm:$0xff]
  %v36 = vld [vmem:[%s0 + $0x70] sm:$0xff]
  %v37 = vld [vmem:[%s0 + $0x78] sm:$0xff]
  %v38 = vld [vmem:[%s0 + $0x80] sm:$0xff]
  %v39 = vld [vmem:[%s0 + $0x88] sm:$0xff]
  %v40 = vld [vmem:[%s0 + $0x90] sm:$0xff]
  %v41 = vld [vmem:[%s0 + $0x98] sm:$0xff]
  %v42 = vld [vmem:[%s0 + $0xa0] sm:$0xff]
  %v43 = vld [vmem:[%s0 + $0xa8] sm:$0xff]
  %v44 = vld [vmem:[%s0 + $0xb0] sm:$0xff]
  %v45 = vld [vmem:[%s0 + $0xb8] sm:$0xff]
  %v46 = vld [vmem:[%s0 + $0xc0] sm:$0xff]
  %v47 = vld [vmem:[%s0 + $0xc8] sm:$0xff]
  %v48 = vld [vmem:[%s0 + $0xd0] sm:$0xff]
  %v49 = vld [vmem:[%s0 + $0xd8] sm:$0xff]
  %v50 = vld [vmem:[%s0 + $0xe0] sm:$0xff]
  %v51 = vld [vmem:[%s0 + $0xe8] sm:$0xff]
  %v52 = vld [vmem:[%s0 + $0xf0] sm:$0xff]
  %v53 = vld [vmem:[%s0 + $0xf8] sm:$0xff]
  %v54 = vld [vmem:[%s0 + $0x100] sm:$0xff]
  %v55 = vld [vmem:[%s0 + $0x108] sm:$0xff]
  %v56 = vld [vmem:[%s0 + $0x110] sm:$0xff]
  %v57 = vld [vmem:[%s0 + $0x118] sm:$0xff]
  %v58 = vld [vmem:[%s0 + $0x120] sm:$0xff]
  %v59 = vld [vmem:[%s0 + $0x128] sm:$0xff]
  %v60 = vld [vmem:[%s0 + $0x130] sm:$0xff]
  %v61 = vld [vmem:[%s0 + $0x138] sm:$0xff]
  %v62 = vld [vmem:[%s0 + $0x140] sm:$0xff]
  %v63 = vld [vmem:[%s0 + $0x148] sm:$0xff]
  %v64 = vld [vmem:[%s0 + $0x150] sm:$0xff]
  %v65 = vld [vmem:[%s0 + $0x158] sm:$0xff]
  %v66 = vld [vmem:[%s0 + $0x160] sm:$0xff]
  %v67 = vld [vmem:[%s0 + $0x168] sm:$0xff]
  %v68 = vld [vmem:[%s0 + $0x170] sm:$0xff]
  %v69 = vld [vmem:[%s0 + $0x178] sm:$0xff]
  %v70 = vld [vmem:[%s0 + $0x180] sm:$0xff]
  %v71 = vld [vmem:[%s0 + $0x188] sm:$0xff]
  %v72 = vld [vmem:[%s0 + $0x190] sm:$0xff]
  %v73 = vld [vmem:[%s0 + $0x198] sm:$0xff]
  %v74 = vld [vmem:[%s0 + $0x1a0] sm:$0xff]
  %v75 = vld [vmem:[%s0 + $0x1a8] sm:$0xff]
  %v76 = vld [vmem:[%s0 + $0x1b0] sm:$0xff]
  %v77 = vld [vmem:[%s0 + $0x1b8] sm:$0xff]
  %v78 = vld [vmem:[%s0 + $0x1c0] sm:$0xff]
  %v79 = vld [vmem:[%s0 + $0x1c8] sm:$0xff]
  %v80 = vld [vmem:[%s0 + $0x1d0] sm:$0xff]
  %v81 = vld [vmem:[%s0 + $0x1d8] sm:$0xff]
  %v82 = vld [vmem:[%s0 + $0x1e0] sm:$0xff]
  %v83 = vld [vmem:[%s0 + $0x1e8] sm:$0xff]
  %v84 = vld [vmem:[%s0 + $0x1f0] sm:$0xff]
  %v85 = vld [vmem:[%s0 + $0x1f8] sm:$0xff]
  %v86 = vld [vmem:[%s0 + $0x200] sm:$0xff]
  %v87 = vld [vmem:[%s0 + $0x208] sm:$0xff]
  %v88 = vld [vmem:[%s0 + $0x210] sm:$0xff]
  %v89 = vld [vmem:[%s0 + $0x218] sm:$0xff]
  %v90 = vld [vmem:[%s0 + $0x220] sm:$0xff]
  %v91 = vld [vmem:[%s0 + $0x228] sm:$0xff]
  %v92 = vld [vmem:[%s0 + $0x230] sm:$0xff]
  %v93 = vld [vmem:[%s0 + $0x238] sm:$0xff]
  %v94 = vld [vmem:[%s0 + $0x240] sm:$0xff]
  %v95 = vld [vmem:[%s0 + $0x248] sm:$0xff]
  %v96 = vld [vmem:[%s0 + $0x250] sm:$0xff]
  %v97 = vld [vmem:[%s0 + $0x258] sm:$0xff]
  %v98 = vld [vmem:[%s0 + $0x260] sm:$0xff]
  %v99 = vld [vmem:[%s0 + $0x268] sm:$0xff]
  %v100 = vld [vmem:[%s0 + $0x270] sm:$0xff]
  %v101 = vld [vmem:[%s0 + $0x278] sm:$0xff]
  %v102 = vld [vmem:[%s0 + $0x280] sm:$0xff]
  %v103 = vld [vmem:[%s0 + $0x288] sm:$0xff]
  %v104 = vld [vmem:[%s0 + $0x290] sm:$0xff]
  %v105 = vld [vmem:[%s0 + $0x298] sm:$0xff]
  %v106 = vld [vmem:[%s0 + $0x2a0] sm:$0xff]
  %v107 = vld [vmem:[%s0 + $0x2a8] sm:$0xff]
  %v108 = vld [vmem:[%s0 + $0x2b0] sm:$0xff]
  %v109 = vld [vmem:[%s0 + $0x2b8] sm:$0xff]
  %v110 = vld [vmem:[%s0 + $0x2c0] sm:$0xff]
  %v111 = vld [vmem:[%s0 + $0x2c8] sm:$0xff]
  %v112 = vld [vmem:[%s0 + $0x2d0] sm:$0xff]
  %v113 = vld [vmem:[%s0 + $0x2d8] sm:$0xff]
  %v114 = vld [vmem:[%s0 + $0x2e0] sm:$0xff]
  %v115 = vld [vmem:[%s0 + $0x2e8] sm:$0xff]
  %v116 = vld [vmem:[%s0 + $0x2f0] sm:$0xff]
  %v117 = vld [vmem:[%s0 + $0x2f8] sm:$0xff]
  %v118 = vld [vmem:[%s0 + $0x300] sm:$0xff]
  %v119 = vld [vmem:[%s0 + $0x308] sm:$0xff]
  %v120 = vld [vmem:[%s0 + $0x310] sm:$0xff]
  %v121 = vld [vmem:[%s0 + $0x318] sm:$0xff]
  %v122 = vld [vmem:[%s0 + $0x320] sm:$0xff]
  %v123 = vld [vmem:[%s0 + $0x328] sm:$0xff]
  %v124 = vld [vmem:[%s0 + $0x330] sm:$0xff]
  %v125 = vld [vmem:[%s0 + $0x338] sm:$0xff]
  %v126 = vld [vmem:[%s0 + $0x340] sm:$0xff]
  %v127 = vld [vmem:[%s0 + $0x348] sm:$0xff]
  %v128 = vld [vmem:[%s0 + $0x350] sm:$0xff]
  %v129 = vld [vmem:[%s0 + $0x358] sm:$0xff]
  %v130 = vld [vmem:[%s0 + $0x360] sm:$0xff]
  %v131 = vld [vmem:[%s0 + $0x368] sm:$0xff]
  %v132 = vld [vmem:[%s0 + $0x370] sm:$0xff]
  %v133 = vld [vmem:[%s0 + $0x378] sm:$0xff]
  %v134 = vld [vmem:[%s0 + $0x380] sm:$0xff]
  %v135 = vld [vmem:[%s0 + $0x388] sm:$0xff]
  %v136 = vld [vmem:[%s0 + $0x390] sm:$0xff]
  %v137 = vld [vmem:[%s0 + $0x398] sm:$0xff]
  %v138 = vld [vmem:[%s0 + $0x3a0] sm:$0xff]
  %v139 = vld [vmem:[%s0 + $0x3a8] sm:$0xff]
  %v140 = vld [vmem:[%s0 + $0x3b0] sm:$0xff]
  %v141 = vld [vmem:[%s0 + $0x3b8] sm:$0xff]
  %v142 = vld [vmem:[%s0 + $0x3c0] sm:$0xff]
  %v143 = vld [vmem:[%s0 + $0x3c8] sm:$0xff]
  %v144 = vld [vmem:[%s0 + $0x3d0] sm:$0xff]
  %v145 = vld [vmem:[%s0 + $0x3d8] sm:$0xff]
  %v146 = vld [vmem:[%s0 + $0x3e0] sm:$0xff]
  %v147 = vld [vmem:[%s0 + $0x3e8] sm:$0xff]
  %v148 = vld [vmem:[%s0 + $0x3f0] sm:$0xff]
  %v149 = vld [vmem:[%s0 + $0x3f8] sm:$0xff]
  %v150 = vld [vmem:[%s1] sm:$0xff]
  %v151 = vld [vmem:[%s1 + $0x8] sm:$0x1]
  %v152 = vld [vmem:[%s2] sm:$0x1]
  %v154 = vlaneseq
  %v155 = vshrl.u32 %v154, 7
  %v156 = vsub.s32 0, %v155
  %v157 = vrot.slane %v152, %v156
  %vm159 = vcmask 72704
  %v161 = vsel %vm159, %v22, 0
  %v164 = vsel %vm159, %v23, 0
  %v167 = vsel %vm159, %v24, 0
  %v170 = vsel %vm159, %v25, 0
  %v173 = vsel %vm159, %v26, 0
  %v176 = vsel %vm159, %v27, 0
  %v179 = vsel %vm159, %v28, 0
  %v182 = vsel %vm159, %v29, 0
  %v185 = vsel %vm159, %v30, 0
  %v188 = vsel %vm159, %v31, 0
  %v191 = vsel %vm159, %v32, 0
  %v194 = vsel %vm159, %v33, 0
  %v197 = vsel %vm159, %v34, 0
  %v200 = vsel %vm159, %v35, 0
  %v203 = vsel %vm159, %v36, 0
  %v206 = vsel %vm159, %v37, 0
  %v209 = vsel %vm159, %v38, 0
  %v212 = vsel %vm159, %v39, 0
  %v215 = vsel %vm159, %v40, 0
  %v218 = vsel %vm159, %v41, 0
  %v221 = vsel %vm159, %v42, 0
  %v224 = vsel %vm159, %v43, 0
  %v227 = vsel %vm159, %v44, 0
  %v230 = vsel %vm159, %v45, 0
  %v233 = vsel %vm159, %v46, 0
  %v236 = vsel %vm159, %v47, 0
  %v239 = vsel %vm159, %v48, 0
  %v242 = vsel %vm159, %v49, 0
  %v245 = vsel %vm159, %v50, 0
  %v248 = vsel %vm159, %v51, 0
  %v251 = vsel %vm159, %v52, 0
  %v254 = vsel %vm159, %v53, 0
  %v257 = vsel %vm159, %v54, 0
  %v260 = vsel %vm159, %v55, 0
  %v263 = vsel %vm159, %v56, 0
  %v266 = vsel %vm159, %v57, 0
  %v269 = vsel %vm159, %v58, 0
  %v272 = vsel %vm159, %v59, 0
  %v275 = vsel %vm159, %v60, 0
  %v278 = vsel %vm159, %v61, 0
  %v281 = vsel %vm159, %v62, 0
  %v284 = vsel %vm159, %v63, 0
  %v287 = vsel %vm159, %v64, 0
  %v290 = vsel %vm159, %v65, 0
  %v293 = vsel %vm159, %v66, 0
  %v296 = vsel %vm159, %v67, 0
  %v299 = vsel %vm159, %v68, 0
  %v302 = vsel %vm159, %v69, 0
  %v305 = vsel %vm159, %v70, 0
  %v308 = vsel %vm159, %v71, 0
  %v311 = vsel %vm159, %v72, 0
  %v314 = vsel %vm159, %v73, 0
  %v317 = vsel %vm159, %v74, 0
  %v320 = vsel %vm159, %v75, 0
  %v323 = vsel %vm159, %v76, 0
  %v326 = vsel %vm159, %v77, 0
  %v329 = vsel %vm159, %v78, 0
  %v332 = vsel %vm159, %v79, 0
  %v335 = vsel %vm159, %v80, 0
  %v338 = vsel %vm159, %v81, 0
  %v341 = vsel %vm159, %v82, 0
  %v344 = vsel %vm159, %v83, 0
  %v347 = vsel %vm159, %v84, 0
  %v350 = vsel %vm159, %v85, 0
  %v353 = vsel %vm159, %v86, 0
  %v356 = vsel %vm159, %v87, 0
  %v359 = vsel %vm159, %v88, 0
  %v362 = vsel %vm159, %v89, 0
  %v365 = vsel %vm159, %v90, 0
  %v368 = vsel %vm159, %v91, 0
  %v371 = vsel %vm159, %v92, 0
  %v374 = vsel %vm159, %v93, 0
  %v377 = vsel %vm159, %v94, 0
  %v380 = vsel %vm159, %v95, 0
  %v383 = vsel %vm159, %v96, 0
  %v386 = vsel %vm159, %v97, 0
  %v389 = vsel %vm159, %v98, 0
  %v392 = vsel %vm159, %v99, 0
  %v395 = vsel %vm159, %v100, 0
  %v398 = vsel %vm159, %v101, 0
  %v401 = vsel %vm159, %v102, 0
  %v404 = vsel %vm159, %v103, 0
  %v407 = vsel %vm159, %v104, 0
  %v410 = vsel %vm159, %v105, 0
  %v413 = vsel %vm159, %v106, 0
  %v416 = vsel %vm159, %v107, 0
  %v419 = vsel %vm159, %v108, 0
  %v422 = vsel %vm159, %v109, 0
  %v425 = vsel %vm159, %v110, 0
  %v428 = vsel %vm159, %v111, 0
  %v431 = vsel %vm159, %v112, 0
  %v434 = vsel %vm159, %v113, 0
  %v437 = vsel %vm159, %v114, 0
  %v440 = vsel %vm159, %v115, 0
  %v443 = vsel %vm159, %v116, 0
  %v446 = vsel %vm159, %v117, 0
  %v449 = vsel %vm159, %v118, 0
  %v452 = vsel %vm159, %v119, 0
  %v455 = vsel %vm159, %v120, 0
  %v458 = vsel %vm159, %v121, 0
  %v461 = vsel %vm159, %v122, 0
  %v464 = vsel %vm159, %v123, 0
  %v467 = vsel %vm159, %v124, 0
  %v470 = vsel %vm159, %v125, 0
  %v473 = vsel %vm159, %v126, 0
  %v476 = vsel %vm159, %v127, 0
  %v479 = vsel %vm159, %v128, 0
  %v482 = vsel %vm159, %v129, 0
  %v485 = vsel %vm159, %v130, 0
  %v488 = vsel %vm159, %v131, 0
  %v491 = vsel %vm159, %v132, 0
  %v494 = vsel %vm159, %v133, 0
  %v497 = vsel %vm159, %v134, 0
  %v500 = vsel %vm159, %v135, 0
  %v503 = vsel %vm159, %v136, 0
  %v506 = vsel %vm159, %v137, 0
  %v509 = vsel %vm159, %v138, 0
  %v512 = vsel %vm159, %v139, 0
  %v515 = vsel %vm159, %v140, 0
  %v518 = vsel %vm159, %v141, 0
  %v521 = vsel %vm159, %v142, 0
  %v524 = vsel %vm159, %v143, 0
  %v527 = vsel %vm159, %v144, 0
  %v530 = vsel %vm159, %v145, 0
  %v533 = vsel %vm159, %v146, 0
  %v536 = vsel %vm159, %v147, 0
  %v539 = vsel %vm159, %v148, 0
  %v542 = vsel %vm159, %v149, 0
  %vm544 = vcmask 1040384
  %v546 = vsel %vm544, %v151, 0
  %548 = vmatprep.subr.mxu0 0.0
  %549 = vmatpush1.msra.mxu0 %v150
  %550 = vmatprep.subr.mxu0 0.0
  %551 = vmatpush1.msra.mxu0 %v546
  %552 = vmatprep.subr.mxu0 0.0
  %553 = vmatpush1.msra.mxu0 0.0
  %554 = vmatprep.subr.mxu0 0.0
  %555 = vmatpush1.msra.mxu0 0.0
  %556 = vmatprep.subr.mxu0 0.0
  %557 = vmatpush1.msra.mxu0 0.0
  %558 = vmatprep.subr.mxu0 0.0
  %559 = vmatpush1.msra.mxu0 0.0
  %560 = vmatprep.subr.mxu0 0.0
  %561 = vmatpush1.msra.mxu0 0.0
  %562 = vmatprep.subr.mxu0 0.0
  %563 = vmatpush1.msra.mxu0 0.0
  %564 = vmatprep.subr.mxu0 0.0
  %565 = vmatpush1.msra.mxu0 0.0
  %566 = vmatprep.subr.mxu0 0.0
  %567 = vmatpush1.msra.mxu0 0.0
  %568 = vmatprep.subr.mxu0 0.0
  %569 = vmatpush1.msra.mxu0 0.0
  %570 = vmatprep.subr.mxu0 0.0
  %571 = vmatpush1.msra.mxu0 0.0
  %572 = vmatprep.subr.mxu0 0.0
  %573 = vmatpush1.msra.mxu0 0.0
  %574 = vmatprep.subr.mxu0 0.0
  %575 = vmatpush1.msra.mxu0 0.0
  %576 = vmatprep.subr.mxu0 0.0
  %577 = vmatpush1.msra.mxu0 0.0
  %578 = vmatprep.subr.mxu0 0.0
  %579 = vmatpush1.msra.mxu0 0.0
  %580 = vmatprep.subr.mxu0 0.0
  %581 = vmatpush1.msra.mxu0 0.0
  %582 = vmatprep.subr.mxu0 0.0
  %583 = vmatpush1.msra.mxu0 0.0
  %584 = vmatprep.subr.mxu0 0.0
  %585 = vmatpush1.msra.mxu0 0.0
  %586 = vmatprep.subr.mxu0 0.0
  %587 = vmatpush1.msra.mxu0 0.0
  %588 = vmatprep.subr.mxu0 0.0
  %589 = vmatpush1.msra.mxu0 0.0
  %590 = vmatprep.subr.mxu0 0.0
  %591 = vmatpush1.msra.mxu0 0.0
  %592 = vmatprep.subr.mxu0 0.0
  %593 = vmatpush1.msra.mxu0 0.0
  %594 = vmatprep.subr.mxu0 0.0
  %595 = vmatpush1.msra.mxu0 0.0
  %596 = vmatprep.subr.mxu0 0.0
  %597 = vmatpush1.msra.mxu0 0.0
  %598 = vmatprep.subr.mxu0 0.0
  %599 = vmatpush1.msra.mxu0 0.0
  %600 = vmatprep.subr.mxu0 0.0
  %601 = vmatpush1.msra.mxu0 0.0
  %602 = vmatprep.subr.mxu0 0.0
  %603 = vmatpush1.msra.mxu0 0.0
  %604 = vmatprep.subr.mxu0 0.0
  %605 = vmatpush1.msra.mxu0 0.0
  %606 = vmatprep.subr.mxu0 0.0
  %607 = vmatpush1.msra.mxu0 0.0
  %608 = vmatprep.subr.mxu0 0.0
  %609 = vmatpush1.msra.mxu0 0.0
  %610 = vmatprep.subr.mxu0 0.0
  %611 = vmatpush1.msra.mxu0 0.0
  %612 = vmatprep.mubr.f32.mxu0 0.0
  %613 = vmatmul.mubr.f32.gmra.mrb[0].mxu0 %v161
  %v614 = vpop.f32.mrb[0].mxu0
  %v615 = vadd.f32 %v157, %v614
  %v616 = vpop.f32.mrb[0].mxu0
  %617 = vmatprep.mubr.f32.mxu0 0.0
  %618 = vmatmul.mubr.f32.gmra.mrb[0].mxu0 %v164
  %v619 = vpop.f32.mrb[0].mxu0
  %v620 = vadd.f32 %v157, %v619
  %v621 = vpop.f32.mrb[0].mxu0
  %622 = vmatprep.mubr.f32.mxu0 0.0
  %623 = vmatmul.mubr.f32.gmra.mrb[0].mxu0 %v167
  %v624 = vpop.f32.mrb[0].mxu0
  %v625 = vadd.f32 %v157, %v624
  %v626 = vpop.f32.mrb[0].mxu0
  %627 = vmatprep.mubr.f32.mxu0 0.0
  %628 = vmatmul.mubr.f32.gmra.mrb[0].mxu0 %v170
  %v629 = vpop.f32.mrb[0].mxu0
  %v630 = vadd.f32 %v157, %v629
  %v631 = vpop.f32.mrb[0].mxu0
  %632 = vmatprep.mubr.f32.mxu0 0.0
  %633 = vmatmul.mubr.f32.gmra.mrb[0].mxu0 %v173
  %v634 = vpop.f32.mrb[0].mxu0
  %v635 = vadd.f32 %v157, %v634
  %v636 = vpop.f32.mrb[0].mxu0
  %637 = vmatprep.mubr.f32.mxu0 0.0
  %638 = vmatmul.mubr.f32.gmra.mrb[0].mxu0 %v176
  %v639 = vpop.f32.mrb[0].mxu0
  %v640 = vadd.f32 %v157, %v639
  %v641 = vpop.f32.mrb[0].mxu0
  %642 = vmatprep.mubr.f32.mxu0 0.0
  %643 = vmatmul.mubr.f32.gmra.mrb[0].mxu0 %v179
  %v644 = vpop.f32.mrb[0].mxu0
  %v645 = vadd.f32 %v157, %v644
  %v646 = vpop.f32.mrb[0].mxu0
  %647 = vmatprep.mubr.f32.mxu0 0.0
  %648 = vmatmul.mubr.f32.gmra.mrb[0].mxu0 %v182
  %v649 = vpop.f32.mrb[0].mxu0
  %v650 = vadd.f32 %v157, %v649
  %v651 = vpop.f32.mrb[0].mxu0
  %652 = vmatprep.mubr.f32.mxu0 0.0
  %653 = vmatmul.mubr.f32.gmra.mrb[0].mxu0 %v185
  %v654 = vpop.f32.mrb[0].mxu0
  %v655 = vadd.f32 %v157, %v654
  %v656 = vpop.f32.mrb[0].mxu0
  %657 = vmatprep.mubr.f32.mxu0 0.0
  %658 = vmatmul.mubr.f32.gmra.mrb[0].mxu0 %v188
  %v659 = vpop.f32.mrb[0].mxu0
  %v660 = vadd.f32 %v157, %v659
  %v661 = vpop.f32.mrb[0].mxu0
  %662 = vmatprep.mubr.f32.mxu0 0.0
  %663 = vmatmul.mubr.f32.gmra.mrb[0].mxu0 %v191
  %v664 = vpop.f32.mrb[0].mxu0
  %v665 = vadd.f32 %v157, %v664
  %v666 = vpop.f32.mrb[0].mxu0
  %667 = vmatprep.mubr.f32.mxu0 0.0
  %668 = vmatmul.mubr.f32.gmra.mrb[0].mxu0 %v194
  %v669 = vpop.f32.mrb[0].mxu0
  %v670 = vadd.f32 %v157, %v669
  %v671 = vpop.f32.mrb[0].mxu0
  %672 = vmatprep.mubr.f32.mxu0 0.0
  %673 = vmatmul.mubr.f32.gmra.mrb[0].mxu0 %v197
  %v674 = vpop.f32.mrb[0].mxu0
  %v675 = vadd.f32 %v157, %v674
  %v676 = vpop.f32.mrb[0].mxu0
  %677 = vmatprep.mubr.f32.mxu0 0.0
  %678 = vmatmul.mubr.f32.gmra.mrb[0].mxu0 %v200
  %v679 = vpop.f32.mrb[0].mxu0
  %v680 = vadd.f32 %v157, %v679
  %v681 = vpop.f32.mrb[0].mxu0
  %682 = vmatprep.mubr.f32.mxu0 0.0
  %683 = vmatmul.mubr.f32.gmra.mrb[0].mxu0 %v203
  %v684 = vpop.f32.mrb[0].mxu0
  %v685 = vadd.f32 %v157, %v684
  %v686 = vpop.f32.mrb[0].mxu0
  %687 = vmatprep.mubr.f32.mxu0 0.0
  %688 = vmatmul.mubr.f32.gmra.mrb[0].mxu0 %v206
  %v689 = vpop.f32.mrb[0].mxu0
  %v690 = vadd.f32 %v157, %v689
  %v691 = vpop.f32.mrb[0].mxu0
  %692 = vmatprep.mubr.f32.mxu0 0.0
  %693 = vmatmul.mubr.f32.gmra.mrb[0].mxu0 %v209
  %v694 = vpop.f32.mrb[0].mxu0
  %v695 = vadd.f32 %v157, %v694
  %v696 = vpop.f32.mrb[0].mxu0
  %697 = vmatprep.mubr.f32.mxu0 0.0
  %698 = vmatmul.mubr.f32.gmra.mrb[0].mxu0 %v212
  %v699 = vpop.f32.mrb[0].mxu0
  %v700 = vadd.f32 %v157, %v699
  %v701 = vpop.f32.mrb[0].mxu0
  %702 = vmatprep.mubr.f32.mxu0 0.0
  %703 = vmatmul.mubr.f32.gmra.mrb[0].mxu0 %v215
  %v704 = vpop.f32.mrb[0].mxu0
  %v705 = vadd.f32 %v157, %v704
  %v706 = vpop.f32.mrb[0].mxu0
  %707 = vmatprep.mubr.f32.mxu0 0.0
  %708 = vmatmul.mubr.f32.gmra.mrb[0].mxu0 %v218
  %v709 = vpop.f32.mrb[0].mxu0
  %v710 = vadd.f32 %v157, %v709
  %v711 = vpop.f32.mrb[0].mxu0
  %712 = vmatprep.mubr.f32.mxu0 0.0
  %713 = vmatmul.mubr.f32.gmra.mrb[0].mxu0 %v221
  %v714 = vpop.f32.mrb[0].mxu0
  %v715 = vadd.f32 %v157, %v714
  %v716 = vpop.f32.mrb[0].mxu0
  %717 = vmatprep.mubr.f32.mxu0 0.0
  %718 = vmatmul.mubr.f32.gmra.mrb[0].mxu0 %v224
  %v719 = vpop.f32.mrb[0].mxu0
  %v720 = vadd.f32 %v157, %v719
  %v721 = vpop.f32.mrb[0].mxu0
  %722 = vmatprep.mubr.f32.mxu0 0.0
  %723 = vmatmul.mubr.f32.gmra.mrb[0].mxu0 %v227
  %v724 = vpop.f32.mrb[0].mxu0
  %v725 = vadd.f32 %v157, %v724
  %v726 = vpop.f32.mrb[0].mxu0
  %727 = vmatprep.mubr.f32.mxu0 0.0
  %728 = vmatmul.mubr.f32.gmra.mrb[0].mxu0 %v230
  %v729 = vpop.f32.mrb[0].mxu0
  %v730 = vadd.f32 %v157, %v729
  %v731 = vpop.f32.mrb[0].mxu0
  %732 = vmatprep.mubr.f32.mxu0 0.0
  %733 = vmatmul.mubr.f32.gmra.mrb[0].mxu0 %v233
  %v734 = vpop.f32.mrb[0].mxu0
  %v735 = vadd.f32 %v157, %v734
  %v736 = vpop.f32.mrb[0].mxu0
  %737 = vmatprep.mubr.f32.mxu0 0.0
  %738 = vmatmul.mubr.f32.gmra.mrb[0].mxu0 %v236
  %v739 = vpop.f32.mrb[0].mxu0
  %v740 = vadd.f32 %v157, %v739
  %v741 = vpop.f32.mrb[0].mxu0
  %742 = vmatprep.mubr.f32.mxu0 0.0
  %743 = vmatmul.mubr.f32.gmra.mrb[0].mxu0 %v239
  %v744 = vpop.f32.mrb[0].mxu0
  %v745 = vadd.f32 %v157, %v744
  %v746 = vpop.f32.mrb[0].mxu0
  %747 = vmatprep.mubr.f32.mxu0 0.0
  %748 = vmatmul.mubr.f32.gmra.mrb[0].mxu0 %v242
  %v749 = vpop.f32.mrb[0].mxu0
  %v750 = vadd.f32 %v157, %v749
  %v751 = vpop.f32.mrb[0].mxu0
  %752 = vmatprep.mubr.f32.mxu0 0.0
  %753 = vmatmul.mubr.f32.gmra.mrb[0].mxu0 %v245
  %v754 = vpop.f32.mrb[0].mxu0
  %v755 = vadd.f32 %v157, %v754
  %v756 = vpop.f32.mrb[0].mxu0
  %757 = vmatprep.mubr.f32.mxu0 0.0
  %758 = vmatmul.mubr.f32.gmra.mrb[0].mxu0 %v248
  %v759 = vpop.f32.mrb[0].mxu0
  %v760 = vadd.f32 %v157, %v759
  %v761 = vpop.f32.mrb[0].mxu0
  %762 = vmatprep.mubr.f32.mxu0 0.0
  %763 = vmatmul.mubr.f32.gmra.mrb[0].mxu0 %v251
  %v764 = vpop.f32.mrb[0].mxu0
  %v765 = vadd.f32 %v157, %v764
  %v766 = vpop.f32.mrb[0].mxu0
  %767 = vmatprep.mubr.f32.mxu0 0.0
  %768 = vmatmul.mubr.f32.gmra.mrb[0].mxu0 %v254
  %v769 = vpop.f32.mrb[0].mxu0
  %v770 = vadd.f32 %v157, %v769
  %v771 = vpop.f32.mrb[0].mxu0
  %772 = vmatprep.mubr.f32.mxu0 0.0
  %773 = vmatmul.mubr.f32.gmra.mrb[0].mxu0 %v257
  %v774 = vpop.f32.mrb[0].mxu0
  %v775 = vadd.f32 %v157, %v774
  %v776 = vpop.f32.mrb[0].mxu0
  %777 = vmatprep.mubr.f32.mxu0 0.0
  %778 = vmatmul.mubr.f32.gmra.mrb[0].mxu0 %v260
  %v779 = vpop.f32.mrb[0].mxu0
  %v780 = vadd.f32 %v157, %v779
  %v781 = vpop.f32.mrb[0].mxu0
  %782 = vmatprep.mubr.f32.mxu0 0.0
  %783 = vmatmul.mubr.f32.gmra.mrb[0].mxu0 %v263
  %v784 = vpop.f32.mrb[0].mxu0
  %v785 = vadd.f32 %v157, %v784
  %v786 = vpop.f32.mrb[0].mxu0
  %787 = vmatprep.mubr.f32.mxu0 0.0
  %788 = vmatmul.mubr.f32.gmra.mrb[0].mxu0 %v266
  %v789 = vpop.f32.mrb[0].mxu0
  %v790 = vadd.f32 %v157, %v789
  %v791 = vpop.f32.mrb[0].mxu0
  %792 = vmatprep.mubr.f32.mxu0 0.0
  %793 = vmatmul.mubr.f32.gmra.mrb[0].mxu0 %v269
  %v794 = vpop.f32.mrb[0].mxu0
  %v795 = vadd.f32 %v157, %v794
  %v796 = vpop.f32.mrb[0].mxu0
  %797 = vmatprep.mubr.f32.mxu0 0.0
  %798 = vmatmul.mubr.f32.gmra.mrb[0].mxu0 %v272
  %v799 = vpop.f32.mrb[0].mxu0
  %v800 = vadd.f32 %v157, %v799
  %v801 = vpop.f32.mrb[0].mxu0
  %802 = vmatprep.mubr.f32.mxu0 0.0
  %803 = vmatmul.mubr.f32.gmra.mrb[0].mxu0 %v275
  %v804 = vpop.f32.mrb[0].mxu0
  %v805 = vadd.f32 %v157, %v804
  %v806 = vpop.f32.mrb[0].mxu0
  %807 = vmatprep.mubr.f32.mxu0 0.0
  %808 = vmatmul.mubr.f32.gmra.mrb[0].mxu0 %v278
  %v809 = vpop.f32.mrb[0].mxu0
  %v810 = vadd.f32 %v157, %v809
  %v811 = vpop.f32.mrb[0].mxu0
  %812 = vmatprep.mubr.f32.mxu0 0.0
  %813 = vmatmul.mubr.f32.gmra.mrb[0].mxu0 %v281
  %v814 = vpop.f32.mrb[0].mxu0
  %v815 = vadd.f32 %v157, %v814
  %v816 = vpop.f32.mrb[0].mxu0
  %817 = vmatprep.mubr.f32.mxu0 0.0
  %818 = vmatmul.mubr.f32.gmra.mrb[0].mxu0 %v284
  %v819 = vpop.f32.mrb[0].mxu0
  %v820 = vadd.f32 %v157, %v819
  %v821 = vpop.f32.mrb[0].mxu0
  %822 = vmatprep.mubr.f32.mxu0 0.0
  %823 = vmatmul.mubr.f32.gmra.mrb[0].mxu0 %v287
  %v824 = vpop.f32.mrb[0].mxu0
  %v825 = vadd.f32 %v157, %v824
  %v826 = vpop.f32.mrb[0].mxu0
  %827 = vmatprep.mubr.f32.mxu0 0.0
  %828 = vmatmul.mubr.f32.gmra.mrb[0].mxu0 %v290
  %v829 = vpop.f32.mrb[0].mxu0
  %v830 = vadd.f32 %v157, %v829
  %v831 = vpop.f32.mrb[0].mxu0
  %832 = vmatprep.mubr.f32.mxu0 0.0
  %833 = vmatmul.mubr.f32.gmra.mrb[0].mxu0 %v293
  %v834 = vpop.f32.mrb[0].mxu0
  %v835 = vadd.f32 %v157, %v834
  %v836 = vpop.f32.mrb[0].mxu0
  %837 = vmatprep.mubr.f32.mxu0 0.0
  %838 = vmatmul.mubr.f32.gmra.mrb[0].mxu0 %v296
  %v839 = vpop.f32.mrb[0].mxu0
  %v840 = vadd.f32 %v157, %v839
  %v841 = vpop.f32.mrb[0].mxu0
  %842 = vmatprep.mubr.f32.mxu0 0.0
  %843 = vmatmul.mubr.f32.gmra.mrb[0].mxu0 %v299
  %v844 = vpop.f32.mrb[0].mxu0
  %v845 = vadd.f32 %v157, %v844
  %v846 = vpop.f32.mrb[0].mxu0
  %847 = vmatprep.mubr.f32.mxu0 0.0
  %848 = vmatmul.mubr.f32.gmra.mrb[0].mxu0 %v302
  %v849 = vpop.f32.mrb[0].mxu0
  %v850 = vadd.f32 %v157, %v849
  %v851 = vpop.f32.mrb[0].mxu0
  %852 = vmatprep.mubr.f32.mxu0 0.0
  %853 = vmatmul.mubr.f32.gmra.mrb[0].mxu0 %v305
  %v854 = vpop.f32.mrb[0].mxu0
  %v855 = vadd.f32 %v157, %v854
  %v856 = vpop.f32.mrb[0].mxu0
  %857 = vmatprep.mubr.f32.mxu0 0.0
  %858 = vmatmul.mubr.f32.gmra.mrb[0].mxu0 %v308
  %v859 = vpop.f32.mrb[0].mxu0
  %v860 = vadd.f32 %v157, %v859
  %v861 = vpop.f32.mrb[0].mxu0
  %862 = vmatprep.mubr.f32.mxu0 0.0
  %863 = vmatmul.mubr.f32.gmra.mrb[0].mxu0 %v311
  %v864 = vpop.f32.mrb[0].mxu0
  %v865 = vadd.f32 %v157, %v864
  %v866 = vpop.f32.mrb[0].mxu0
  %867 = vmatprep.mubr.f32.mxu0 0.0
  %868 = vmatmul.mubr.f32.gmra.mrb[0].mxu0 %v314
  %v869 = vpop.f32.mrb[0].mxu0
  %v870 = vadd.f32 %v157, %v869
  %v871 = vpop.f32.mrb[0].mxu0
  %872 = vmatprep.mubr.f32.mxu0 0.0
  %873 = vmatmul.mubr.f32.gmra.mrb[0].mxu0 %v317
  %v874 = vpop.f32.mrb[0].mxu0
  %v875 = vadd.f32 %v157, %v874
  %v876 = vpop.f32.mrb[0].mxu0
  %877 = vmatprep.mubr.f32.mxu0 0.0
  %878 = vmatmul.mubr.f32.gmra.mrb[0].mxu0 %v320
  %v879 = vpop.f32.mrb[0].mxu0
  %v880 = vadd.f32 %v157, %v879
  %v881 = vpop.f32.mrb[0].mxu0
  %882 = vmatprep.mubr.f32.mxu0 0.0
  %883 = vmatmul.mubr.f32.gmra.mrb[0].mxu0 %v323
  %v884 = vpop.f32.mrb[0].mxu0
  %v885 = vadd.f32 %v157, %v884
  %v886 = vpop.f32.mrb[0].mxu0
  %887 = vmatprep.mubr.f32.mxu0 0.0
  %888 = vmatmul.mubr.f32.gmra.mrb[0].mxu0 %v326
  %v889 = vpop.f32.mrb[0].mxu0
  %v890 = vadd.f32 %v157, %v889
  %v891 = vpop.f32.mrb[0].mxu0
  %892 = vmatprep.mubr.f32.mxu0 0.0
  %893 = vmatmul.mubr.f32.gmra.mrb[0].mxu0 %v329
  %v894 = vpop.f32.mrb[0].mxu0
  %v895 = vadd.f32 %v157, %v894
  %v896 = vpop.f32.mrb[0].mxu0
  %897 = vmatprep.mubr.f32.mxu0 0.0
  %898 = vmatmul.mubr.f32.gmra.mrb[0].mxu0 %v332
  %v899 = vpop.f32.mrb[0].mxu0
  %v900 = vadd.f32 %v157, %v899
  %v901 = vpop.f32.mrb[0].mxu0
  %902 = vmatprep.mubr.f32.mxu0 0.0
  %903 = vmatmul.mubr.f32.gmra.mrb[0].mxu0 %v335
  %v904 = vpop.f32.mrb[0].mxu0
  %v905 = vadd.f32 %v157, %v904
  %v906 = vpop.f32.mrb[0].mxu0
  %907 = vmatprep.mubr.f32.mxu0 0.0
  %908 = vmatmul.mubr.f32.gmra.mrb[0].mxu0 %v338
  %v909 = vpop.f32.mrb[0].mxu0
  %v910 = vadd.f32 %v157, %v909
  %v911 = vpop.f32.mrb[0].mxu0
  %912 = vmatprep.mubr.f32.mxu0 0.0
  %913 = vmatmul.mubr.f32.gmra.mrb[0].mxu0 %v341
  %v914 = vpop.f32.mrb[0].mxu0
  %v915 = vadd.f32 %v157, %v914
  %v916 = vpop.f32.mrb[0].mxu0
  %917 = vmatprep.mubr.f32.mxu0 0.0
  %918 = vmatmul.mubr.f32.gmra.mrb[0].mxu0 %v344
  %v919 = vpop.f32.mrb[0].mxu0
  %v920 = vadd.f32 %v157, %v919
  %v921 = vpop.f32.mrb[0].mxu0
  %922 = vmatprep.mubr.f32.mxu0 0.0
  %923 = vmatmul.mubr.f32.gmra.mrb[0].mxu0 %v347
  %v924 = vpop.f32.mrb[0].mxu0
  %v925 = vadd.f32 %v157, %v924
  %v926 = vpop.f32.mrb[0].mxu0
  %927 = vmatprep.mubr.f32.mxu0 0.0
  %928 = vmatmul.mubr.f32.gmra.mrb[0].mxu0 %v350
  %v929 = vpop.f32.mrb[0].mxu0
  %v930 = vadd.f32 %v157, %v929
  %v931 = vpop.f32.mrb[0].mxu0
  %932 = vmatprep.mubr.f32.mxu0 0.0
  %933 = vmatmul.mubr.f32.gmra.mrb[0].mxu0 %v353
  %v934 = vpop.f32.mrb[0].mxu0
  %v935 = vadd.f32 %v157, %v934
  %v936 = vpop.f32.mrb[0].mxu0
  %937 = vmatprep.mubr.f32.mxu0 0.0
  %938 = vmatmul.mubr.f32.gmra.mrb[0].mxu0 %v356
  %v939 = vpop.f32.mrb[0].mxu0
  %v940 = vadd.f32 %v157, %v939
  %v941 = vpop.f32.mrb[0].mxu0
  %942 = vmatprep.mubr.f32.mxu0 0.0
  %943 = vmatmul.mubr.f32.gmra.mrb[0].mxu0 %v359
  %v944 = vpop.f32.mrb[0].mxu0
  %v945 = vadd.f32 %v157, %v944
  %v946 = vpop.f32.mrb[0].mxu0
  %947 = vmatprep.mubr.f32.mxu0 0.0
  %948 = vmatmul.mubr.f32.gmra.mrb[0].mxu0 %v362
  %v949 = vpop.f32.mrb[0].mxu0
  %v950 = vadd.f32 %v157, %v949
  %v951 = vpop.f32.mrb[0].mxu0
  %952 = vmatprep.mubr.f32.mxu0 0.0
  %953 = vmatmul.mubr.f32.gmra.mrb[0].mxu0 %v365
  %v954 = vpop.f32.mrb[0].mxu0
  %v955 = vadd.f32 %v157, %v954
  %v956 = vpop.f32.mrb[0].mxu0
  %957 = vmatprep.mubr.f32.mxu0 0.0
  %958 = vmatmul.mubr.f32.gmra.mrb[0].mxu0 %v368
  %v959 = vpop.f32.mrb[0].mxu0
  %v960 = vadd.f32 %v157, %v959
  %v961 = vpop.f32.mrb[0].mxu0
  %962 = vmatprep.mubr.f32.mxu0 0.0
  %963 = vmatmul.mubr.f32.gmra.mrb[0].mxu0 %v371
  %v964 = vpop.f32.mrb[0].mxu0
  %v965 = vadd.f32 %v157, %v964
  %v966 = vpop.f32.mrb[0].mxu0
  %967 = vmatprep.mubr.f32.mxu0 0.0
  %968 = vmatmul.mubr.f32.gmra.mrb[0].mxu0 %v374
  %v969 = vpop.f32.mrb[0].mxu0
  %v970 = vadd.f32 %v157, %v969
  %v971 = vpop.f32.mrb[0].mxu0
  %972 = vmatprep.mubr.f32.mxu0 0.0
  %973 = vmatmul.mubr.f32.gmra.mrb[0].mxu0 %v377
  %v974 = vpop.f32.mrb[0].mxu0
  %v975 = vadd.f32 %v157, %v974
  %v976 = vpop.f32.mrb[0].mxu0
  %977 = vmatprep.mubr.f32.mxu0 0.0
  %978 = vmatmul.mubr.f32.gmra.mrb[0].mxu0 %v380
  %v979 = vpop.f32.mrb[0].mxu0
  %v980 = vadd.f32 %v157, %v979
  %v981 = vpop.f32.mrb[0].mxu0
  %982 = vmatprep.mubr.f32.mxu0 0.0
  %983 = vmatmul.mubr.f32.gmra.mrb[0].mxu0 %v383
  %v984 = vpop.f32.mrb[0].mxu0
  %v985 = vadd.f32 %v157, %v984
  %v986 = vpop.f32.mrb[0].mxu0
  %987 = vmatprep.mubr.f32.mxu0 0.0
  %988 = vmatmul.mubr.f32.gmra.mrb[0].mxu0 %v386
  %v989 = vpop.f32.mrb[0].mxu0
  %v990 = vadd.f32 %v157, %v989
  %v991 = vpop.f32.mrb[0].mxu0
  %992 = vmatprep.mubr.f32.mxu0 0.0
  %993 = vmatmul.mubr.f32.gmra.mrb[0].mxu0 %v389
  %v994 = vpop.f32.mrb[0].mxu0
  %v995 = vadd.f32 %v157, %v994
  %v996 = vpop.f32.mrb[0].mxu0
  %997 = vmatprep.mubr.f32.mxu0 0.0
  %998 = vmatmul.mubr.f32.gmra.mrb[0].mxu0 %v392
  %v999 = vpop.f32.mrb[0].mxu0
  %v1000 = vadd.f32 %v157, %v999
  %v1001 = vpop.f32.mrb[0].mxu0
  %1002 = vmatprep.mubr.f32.mxu0 0.0
  %1003 = vmatmul.mubr.f32.gmra.mrb[0].mxu0 %v395
  %v1004 = vpop.f32.mrb[0].mxu0
  %v1005 = vadd.f32 %v157, %v1004
  %v1006 = vpop.f32.mrb[0].mxu0
  %1007 = vmatprep.mubr.f32.mxu0 0.0
  %1008 = vmatmul.mubr.f32.gmra.mrb[0].mxu0 %v398
  %v1009 = vpop.f32.mrb[0].mxu0
  %v1010 = vadd.f32 %v157, %v1009
  %v1011 = vpop.f32.mrb[0].mxu0
  %1012 = vmatprep.mubr.f32.mxu0 0.0
  %1013 = vmatmul.mubr.f32.gmra.mrb[0].mxu0 %v401
  %v1014 = vpop.f32.mrb[0].mxu0
  %v1015 = vadd.f32 %v157, %v1014
  %v1016 = vpop.f32.mrb[0].mxu0
  %1017 = vmatprep.mubr.f32.mxu0 0.0
  %1018 = vmatmul.mubr.f32.gmra.mrb[0].mxu0 %v404
  %v1019 = vpop.f32.mrb[0].mxu0
  %v1020 = vadd.f32 %v157, %v1019
  %v1021 = vpop.f32.mrb[0].mxu0
  %1022 = vmatprep.mubr.f32.mxu0 0.0
  %1023 = vmatmul.mubr.f32.gmra.mrb[0].mxu0 %v407
  %v1024 = vpop.f32.mrb[0].mxu0
  %v1025 = vadd.f32 %v157, %v1024
  %v1026 = vpop.f32.mrb[0].mxu0
  %1027 = vmatprep.mubr.f32.mxu0 0.0
  %1028 = vmatmul.mubr.f32.gmra.mrb[0].mxu0 %v410
  %v1029 = vpop.f32.mrb[0].mxu0
  %v1030 = vadd.f32 %v157, %v1029
  %v1031 = vpop.f32.mrb[0].mxu0
  %1032 = vmatprep.mubr.f32.mxu0 0.0
  %1033 = vmatmul.mubr.f32.gmra.mrb[0].mxu0 %v413
  %v1034 = vpop.f32.mrb[0].mxu0
  %v1035 = vadd.f32 %v157, %v1034
  %v1036 = vpop.f32.mrb[0].mxu0
  %1037 = vmatprep.mubr.f32.mxu0 0.0
  %1038 = vmatmul.mubr.f32.gmra.mrb[0].mxu0 %v416
  %v1039 = vpop.f32.mrb[0].mxu0
  %v1040 = vadd.f32 %v157, %v1039
  %v1041 = vpop.f32.mrb[0].mxu0
  %1042 = vmatprep.mubr.f32.mxu0 0.0
  %1043 = vmatmul.mubr.f32.gmra.mrb[0].mxu0 %v419
  %v1044 = vpop.f32.mrb[0].mxu0
  %v1045 = vadd.f32 %v157, %v1044
  %v1046 = vpop.f32.mrb[0].mxu0
  %1047 = vmatprep.mubr.f32.mxu0 0.0
  %1048 = vmatmul.mubr.f32.gmra.mrb[0].mxu0 %v422
  %v1049 = vpop.f32.mrb[0].mxu0
  %v1050 = vadd.f32 %v157, %v1049
  %v1051 = vpop.f32.mrb[0].mxu0
  %1052 = vmatprep.mubr.f32.mxu0 0.0
  %1053 = vmatmul.mubr.f32.gmra.mrb[0].mxu0 %v425
  %v1054 = vpop.f32.mrb[0].mxu0
  %v1055 = vadd.f32 %v157, %v1054
  %v1056 = vpop.f32.mrb[0].mxu0
  %1057 = vmatprep.mubr.f32.mxu0 0.0
  %1058 = vmatmul.mubr.f32.gmra.mrb[0].mxu0 %v428
  %v1059 = vpop.f32.mrb[0].mxu0
  %v1060 = vadd.f32 %v157, %v1059
  %v1061 = vpop.f32.mrb[0].mxu0
  %1062 = vmatprep.mubr.f32.mxu0 0.0
  %1063 = vmatmul.mubr.f32.gmra.mrb[0].mxu0 %v431
  %v1064 = vpop.f32.mrb[0].mxu0
  %v1065 = vadd.f32 %v157, %v1064
  %v1066 = vpop.f32.mrb[0].mxu0
  %1067 = vmatprep.mubr.f32.mxu0 0.0
  %1068 = vmatmul.mubr.f32.gmra.mrb[0].mxu0 %v434
  %v1069 = vpop.f32.mrb[0].mxu0
  %v1070 = vadd.f32 %v157, %v1069
  %v1071 = vpop.f32.mrb[0].mxu0
  %1072 = vmatprep.mubr.f32.mxu0 0.0
  %1073 = vmatmul.mubr.f32.gmra.mrb[0].mxu0 %v437
  %v1074 = vpop.f32.mrb[0].mxu0
  %v1075 = vadd.f32 %v157, %v1074
  %v1076 = vpop.f32.mrb[0].mxu0
  %1077 = vmatprep.mubr.f32.mxu0 0.0
  %1078 = vmatmul.mubr.f32.gmra.mrb[0].mxu0 %v440
  %v1079 = vpop.f32.mrb[0].mxu0
  %v1080 = vadd.f32 %v157, %v1079
  %v1081 = vpop.f32.mrb[0].mxu0
  %1082 = vmatprep.mubr.f32.mxu0 0.0
  %1083 = vmatmul.mubr.f32.gmra.mrb[0].mxu0 %v443
  %v1084 = vpop.f32.mrb[0].mxu0
  %v1085 = vadd.f32 %v157, %v1084
  %v1086 = vpop.f32.mrb[0].mxu0
  %1087 = vmatprep.mubr.f32.mxu0 0.0
  %1088 = vmatmul.mubr.f32.gmra.mrb[0].mxu0 %v446
  %v1089 = vpop.f32.mrb[0].mxu0
  %v1090 = vadd.f32 %v157, %v1089
  %v1091 = vpop.f32.mrb[0].mxu0
  %1092 = vmatprep.mubr.f32.mxu0 0.0
  %1093 = vmatmul.mubr.f32.gmra.mrb[0].mxu0 %v449
  %v1094 = vpop.f32.mrb[0].mxu0
  %v1095 = vadd.f32 %v157, %v1094
  %v1096 = vpop.f32.mrb[0].mxu0
  %1097 = vmatprep.mubr.f32.mxu0 0.0
  %1098 = vmatmul.mubr.f32.gmra.mrb[0].mxu0 %v452
  %v1099 = vpop.f32.mrb[0].mxu0
  %v1100 = vadd.f32 %v157, %v1099
  %v1101 = vpop.f32.mrb[0].mxu0
  %1102 = vmatprep.mubr.f32.mxu0 0.0
  %1103 = vmatmul.mubr.f32.gmra.mrb[0].mxu0 %v455
  %v1104 = vpop.f32.mrb[0].mxu0
  %v1105 = vadd.f32 %v157, %v1104
  %v1106 = vpop.f32.mrb[0].mxu0
  %1107 = vmatprep.mubr.f32.mxu0 0.0
  %1108 = vmatmul.mubr.f32.gmra.mrb[0].mxu0 %v458
  %v1109 = vpop.f32.mrb[0].mxu0
  %v1110 = vadd.f32 %v157, %v1109
  %v1111 = vpop.f32.mrb[0].mxu0
  %1112 = vmatprep.mubr.f32.mxu0 0.0
  %1113 = vmatmul.mubr.f32.gmra.mrb[0].mxu0 %v461
  %v1114 = vpop.f32.mrb[0].mxu0
  %v1115 = vadd.f32 %v157, %v1114
  %v1116 = vpop.f32.mrb[0].mxu0
  %1117 = vmatprep.mubr.f32.mxu0 0.0
  %1118 = vmatmul.mubr.f32.gmra.mrb[0].mxu0 %v464
  %v1119 = vpop.f32.mrb[0].mxu0
  %v1120 = vadd.f32 %v157, %v1119
  %v1121 = vpop.f32.mrb[0].mxu0
  %1122 = vmatprep.mubr.f32.mxu0 0.0
  %1123 = vmatmul.mubr.f32.gmra.mrb[0].mxu0 %v467
  %v1124 = vpop.f32.mrb[0].mxu0
  %v1125 = vadd.f32 %v157, %v1124
  %v1126 = vpop.f32.mrb[0].mxu0
  %1127 = vmatprep.mubr.f32.mxu0 0.0
  %1128 = vmatmul.mubr.f32.gmra.mrb[0].mxu0 %v470
  %v1129 = vpop.f32.mrb[0].mxu0
  %v1130 = vadd.f32 %v157, %v1129
  %v1131 = vpop.f32.mrb[0].mxu0
  %1132 = vmatprep.mubr.f32.mxu0 0.0
  %1133 = vmatmul.mubr.f32.gmra.mrb[0].mxu0 %v473
  %v1134 = vpop.f32.mrb[0].mxu0
  %v1135 = vadd.f32 %v157, %v1134
  %v1136 = vpop.f32.mrb[0].mxu0
  %1137 = vmatprep.mubr.f32.mxu0 0.0
  %1138 = vmatmul.mubr.f32.gmra.mrb[0].mxu0 %v476
  %v1139 = vpop.f32.mrb[0].mxu0
  %v1140 = vadd.f32 %v157, %v1139
  %v1141 = vpop.f32.mrb[0].mxu0
  %1142 = vmatprep.mubr.f32.mxu0 0.0
  %1143 = vmatmul.mubr.f32.gmra.mrb[0].mxu0 %v479
  %v1144 = vpop.f32.mrb[0].mxu0
  %v1145 = vadd.f32 %v157, %v1144
  %v1146 = vpop.f32.mrb[0].mxu0
  %1147 = vmatprep.mubr.f32.mxu0 0.0
  %1148 = vmatmul.mubr.f32.gmra.mrb[0].mxu0 %v482
  %v1149 = vpop.f32.mrb[0].mxu0
  %v1150 = vadd.f32 %v157, %v1149
  %v1151 = vpop.f32.mrb[0].mxu0
  %1152 = vmatprep.mubr.f32.mxu0 0.0
  %1153 = vmatmul.mubr.f32.gmra.mrb[0].mxu0 %v485
  %v1154 = vpop.f32.mrb[0].mxu0
  %v1155 = vadd.f32 %v157, %v1154
  %v1156 = vpop.f32.mrb[0].mxu0
  %1157 = vmatprep.mubr.f32.mxu0 0.0
  %1158 = vmatmul.mubr.f32.gmra.mrb[0].mxu0 %v488
  %v1159 = vpop.f32.mrb[0].mxu0
  %v1160 = vadd.f32 %v157, %v1159
  %v1161 = vpop.f32.mrb[0].mxu0
  %1162 = vmatprep.mubr.f32.mxu0 0.0
  %1163 = vmatmul.mubr.f32.gmra.mrb[0].mxu0 %v491
  %v1164 = vpop.f32.mrb[0].mxu0
  %v1165 = vadd.f32 %v157, %v1164
  %v1166 = vpop.f32.mrb[0].mxu0
  %1167 = vmatprep.mubr.f32.mxu0 0.0
  %1168 = vmatmul.mubr.f32.gmra.mrb[0].mxu0 %v494
  %v1169 = vpop.f32.mrb[0].mxu0
  %v1170 = vadd.f32 %v157, %v1169
  %v1171 = vpop.f32.mrb[0].mxu0
  %1172 = vmatprep.mubr.f32.mxu0 0.0
  %1173 = vmatmul.mubr.f32.gmra.mrb[0].mxu0 %v497
  %v1174 = vpop.f32.mrb[0].mxu0
  %v1175 = vadd.f32 %v157, %v1174
  %v1176 = vpop.f32.mrb[0].mxu0
  %1177 = vmatprep.mubr.f32.mxu0 0.0
  %1178 = vmatmul.mubr.f32.gmra.mrb[0].mxu0 %v500
  %v1179 = vpop.f32.mrb[0].mxu0
  %v1180 = vadd.f32 %v157, %v1179
  %v1181 = vpop.f32.mrb[0].mxu0
  %1182 = vmatprep.mubr.f32.mxu0 0.0
  %1183 = vmatmul.mubr.f32.gmra.mrb[0].mxu0 %v503
  %v1184 = vpop.f32.mrb[0].mxu0
  %v1185 = vadd.f32 %v157, %v1184
  %v1186 = vpop.f32.mrb[0].mxu0
  %1187 = vmatprep.mubr.f32.mxu0 0.0
  %1188 = vmatmul.mubr.f32.gmra.mrb[0].mxu0 %v506
  %v1189 = vpop.f32.mrb[0].mxu0
  %v1190 = vadd.f32 %v157, %v1189
  %v1191 = vpop.f32.mrb[0].mxu0
  %1192 = vmatprep.mubr.f32.mxu0 0.0
  %1193 = vmatmul.mubr.f32.gmra.mrb[0].mxu0 %v509
  %v1194 = vpop.f32.mrb[0].mxu0
  %v1195 = vadd.f32 %v157, %v1194
  %v1196 = vpop.f32.mrb[0].mxu0
  %1197 = vmatprep.mubr.f32.mxu0 0.0
  %1198 = vmatmul.mubr.f32.gmra.mrb[0].mxu0 %v512
  %v1199 = vpop.f32.mrb[0].mxu0
  %v1200 = vadd.f32 %v157, %v1199
  %v1201 = vpop.f32.mrb[0].mxu0
  %1202 = vmatprep.mubr.f32.mxu0 0.0
  %1203 = vmatmul.mubr.f32.gmra.mrb[0].mxu0 %v515
  %v1204 = vpop.f32.mrb[0].mxu0
  %v1205 = vadd.f32 %v157, %v1204
  %v1206 = vpop.f32.mrb[0].mxu0
  %1207 = vmatprep.mubr.f32.mxu0 0.0
  %1208 = vmatmul.mubr.f32.gmra.mrb[0].mxu0 %v518
  %v1209 = vpop.f32.mrb[0].mxu0
  %v1210 = vadd.f32 %v157, %v1209
  %v1211 = vpop.f32.mrb[0].mxu0
  %1212 = vmatprep.mubr.f32.mxu0 0.0
  %1213 = vmatmul.mubr.f32.gmra.mrb[0].mxu0 %v521
  %v1214 = vpop.f32.mrb[0].mxu0
  %v1215 = vadd.f32 %v157, %v1214
  %v1216 = vpop.f32.mrb[0].mxu0
  %1217 = vmatprep.mubr.f32.mxu0 0.0
  %1218 = vmatmul.mubr.f32.gmra.mrb[0].mxu0 %v524
  %v1219 = vpop.f32.mrb[0].mxu0
  %v1220 = vadd.f32 %v157, %v1219
  %v1221 = vpop.f32.mrb[0].mxu0
  %1222 = vmatprep.mubr.f32.mxu0 0.0
  %1223 = vmatmul.mubr.f32.gmra.mrb[0].mxu0 %v527
  %v1224 = vpop.f32.mrb[0].mxu0
  %v1225 = vadd.f32 %v157, %v1224
  %v1226 = vpop.f32.mrb[0].mxu0
  %1227 = vmatprep.mubr.f32.mxu0 0.0
  %1228 = vmatmul.mubr.f32.gmra.mrb[0].mxu0 %v530
  %v1229 = vpop.f32.mrb[0].mxu0
  %v1230 = vadd.f32 %v157, %v1229
  %v1231 = vpop.f32.mrb[0].mxu0
  %1232 = vmatprep.mubr.f32.mxu0 0.0
  %1233 = vmatmul.mubr.f32.gmra.mrb[0].mxu0 %v533
  %v1234 = vpop.f32.mrb[0].mxu0
  %v1235 = vadd.f32 %v157, %v1234
  %v1236 = vpop.f32.mrb[0].mxu0
  %1237 = vmatprep.mubr.f32.mxu0 0.0
  %1238 = vmatmul.mubr.f32.gmra.mrb[0].mxu0 %v536
  %v1239 = vpop.f32.mrb[0].mxu0
  %v1240 = vadd.f32 %v157, %v1239
  %v1241 = vpop.f32.mrb[0].mxu0
  %1242 = vmatprep.mubr.f32.mxu0 0.0
  %1243 = vmatmul.mubr.f32.gmra.mrb[0].mxu0 %v539
  %v1244 = vpop.f32.mrb[0].mxu0
  %v1245 = vadd.f32 %v157, %v1244
  %v1246 = vpop.f32.mrb[0].mxu0
  %1247 = vmatprep.mubr.f32.mxu0 0.0
  %1248 = vmatmul.mubr.f32.gmra.mrb[0].mxu0 %v542
  %v1249 = vpop.f32.mrb[0].mxu0
  %v1250 = vadd.f32 %v157, %v1249
  %v1251 = vpop.f32.mrb[0].mxu0
  %1252 = vdwg.mxu0
  %v1253 = vmax.f32 %v615, 0.0
  %v1254 = vmax.f32 %v620, 0.0
  %v1255 = vmax.f32 %v625, 0.0
  %v1256 = vmax.f32 %v630, 0.0
  %v1257 = vmax.f32 %v635, 0.0
  %v1258 = vmax.f32 %v640, 0.0
  %v1259 = vmax.f32 %v645, 0.0
  %v1260 = vmax.f32 %v650, 0.0
  %v1261 = vmax.f32 %v655, 0.0
  %v1262 = vmax.f32 %v660, 0.0
  %v1263 = vmax.f32 %v665, 0.0
  %v1264 = vmax.f32 %v670, 0.0
  %v1265 = vmax.f32 %v675, 0.0
  %v1266 = vmax.f32 %v680, 0.0
  %v1267 = vmax.f32 %v685, 0.0
  %v1268 = vmax.f32 %v690, 0.0
  %v1269 = vmax.f32 %v695, 0.0
  %v1270 = vmax.f32 %v700, 0.0
  %v1271 = vmax.f32 %v705, 0.0
  %v1272 = vmax.f32 %v710, 0.0
  %v1273 = vmax.f32 %v715, 0.0
  %v1274 = vmax.f32 %v720, 0.0
  %v1275 = vmax.f32 %v725, 0.0
  %v1276 = vmax.f32 %v730, 0.0
  %v1277 = vmax.f32 %v735, 0.0
  %v1278 = vmax.f32 %v740, 0.0
  %v1279 = vmax.f32 %v745, 0.0
  %v1280 = vmax.f32 %v750, 0.0
  %v1281 = vmax.f32 %v755, 0.0
  %v1282 = vmax.f32 %v760, 0.0
  %v1283 = vmax.f32 %v765, 0.0
  %v1284 = vmax.f32 %v770, 0.0
  %v1285 = vmax.f32 %v775, 0.0
  %v1286 = vmax.f32 %v780, 0.0
  %v1287 = vmax.f32 %v785, 0.0
  %v1288 = vmax.f32 %v790, 0.0
  %v1289 = vmax.f32 %v795, 0.0
  %v1290 = vmax.f32 %v800, 0.0
  %v1291 = vmax.f32 %v805, 0.0
  %v1292 = vmax.f32 %v810, 0.0
  %v1293 = vmax.f32 %v815, 0.0
  %v1294 = vmax.f32 %v820, 0.0
  %v1295 = vmax.f32 %v825, 0.0
  %v1296 = vmax.f32 %v830, 0.0
  %v1297 = vmax.f32 %v835, 0.0
  %v1298 = vmax.f32 %v840, 0.0
  %v1299 = vmax.f32 %v845, 0.0
  %v1300 = vmax.f32 %v850, 0.0
  %v1301 = vmax.f32 %v855, 0.0
  %v1302 = vmax.f32 %v860, 0.0
  %v1303 = vmax.f32 %v865, 0.0
  %v1304 = vmax.f32 %v870, 0.0
  %v1305 = vmax.f32 %v875, 0.0
  %v1306 = vmax.f32 %v880, 0.0
  %v1307 = vmax.f32 %v885, 0.0
  %v1308 = vmax.f32 %v890, 0.0
  %v1309 = vmax.f32 %v895, 0.0
  %v1310 = vmax.f32 %v900, 0.0
  %v1311 = vmax.f32 %v905, 0.0
  %v1312 = vmax.f32 %v910, 0.0
  %v1313 = vmax.f32 %v915, 0.0
  %v1314 = vmax.f32 %v920, 0.0
  %v1315 = vmax.f32 %v925, 0.0
  %v1316 = vmax.f32 %v930, 0.0
  %v1317 = vmax.f32 %v935, 0.0
  %v1318 = vmax.f32 %v940, 0.0
  %v1319 = vmax.f32 %v945, 0.0
  %v1320 = vmax.f32 %v950, 0.0
  %v1321 = vmax.f32 %v955, 0.0
  %v1322 = vmax.f32 %v960, 0.0
  %v1323 = vmax.f32 %v965, 0.0
  %v1324 = vmax.f32 %v970, 0.0
  %v1325 = vmax.f32 %v975, 0.0
  %v1326 = vmax.f32 %v980, 0.0
  %v1327 = vmax.f32 %v985, 0.0
  %v1328 = vmax.f32 %v990, 0.0
  %v1329 = vmax.f32 %v995, 0.0
  %v1330 = vmax.f32 %v1000, 0.0
  %v1331 = vmax.f32 %v1005, 0.0
  %v1332 = vmax.f32 %v1010, 0.0
  %v1333 = vmax.f32 %v1015, 0.0
  %v1334 = vmax.f32 %v1020, 0.0
  %v1335 = vmax.f32 %v1025, 0.0
  %v1336 = vmax.f32 %v1030, 0.0
  %v1337 = vmax.f32 %v1035, 0.0
  %v1338 = vmax.f32 %v1040, 0.0
  %v1339 = vmax.f32 %v1045, 0.0
  %v1340 = vmax.f32 %v1050, 0.0
  %v1341 = vmax.f32 %v1055, 0.0
  %v1342 = vmax.f32 %v1060, 0.0
  %v1343 = vmax.f32 %v1065, 0.0
  %v1344 = vmax.f32 %v1070, 0.0
  %v1345 = vmax.f32 %v1075, 0.0
  %v1346 = vmax.f32 %v1080, 0.0
  %v1347 = vmax.f32 %v1085, 0.0
  %v1348 = vmax.f32 %v1090, 0.0
  %v1349 = vmax.f32 %v1095, 0.0
  %v1350 = vmax.f32 %v1100, 0.0
  %v1351 = vmax.f32 %v1105, 0.0
  %v1352 = vmax.f32 %v1110, 0.0
  %v1353 = vmax.f32 %v1115, 0.0
  %v1354 = vmax.f32 %v1120, 0.0
  %v1355 = vmax.f32 %v1125, 0.0
  %v1356 = vmax.f32 %v1130, 0.0
  %v1357 = vmax.f32 %v1135, 0.0
  %v1358 = vmax.f32 %v1140, 0.0
  %v1359 = vmax.f32 %v1145, 0.0
  %v1360 = vmax.f32 %v1150, 0.0
  %v1361 = vmax.f32 %v1155, 0.0
  %v1362 = vmax.f32 %v1160, 0.0
  %v1363 = vmax.f32 %v1165, 0.0
  %v1364 = vmax.f32 %v1170, 0.0
  %v1365 = vmax.f32 %v1175, 0.0
  %v1366 = vmax.f32 %v1180, 0.0
  %v1367 = vmax.f32 %v1185, 0.0
  %v1368 = vmax.f32 %v1190, 0.0
  %v1369 = vmax.f32 %v1195, 0.0
  %v1370 = vmax.f32 %v1200, 0.0
  %v1371 = vmax.f32 %v1205, 0.0
  %v1372 = vmax.f32 %v1210, 0.0
  %v1373 = vmax.f32 %v1215, 0.0
  %v1374 = vmax.f32 %v1220, 0.0
  %v1375 = vmax.f32 %v1225, 0.0
  %v1376 = vmax.f32 %v1230, 0.0
  %v1377 = vmax.f32 %v1235, 0.0
  %v1378 = vmax.f32 %v1240, 0.0
  %v1379 = vmax.f32 %v1245, 0.0
  %v1380 = vmax.f32 %v1250, 0.0
  %v1381 = vld [vmem:[%s3] sm:$0x1]
  %v1383 = vlaneseq
  %v1384 = vshrl.u32 %v1383, 7
  %v1385 = vsub.s32 0, %v1384
  %v1386 = vrot.slane %v1381, %v1385
  %v1388 = vmul.f32 %v1253, %v1386
  %v1389 = vmul.f32 %v1254, %v1386
  %v1390 = vmul.f32 %v1255, %v1386
  %v1391 = vmul.f32 %v1256, %v1386
  %v1392 = vmul.f32 %v1257, %v1386
  %v1393 = vmul.f32 %v1258, %v1386
  %v1394 = vmul.f32 %v1259, %v1386
  %v1395 = vmul.f32 %v1260, %v1386
  %v1396 = vmul.f32 %v1261, %v1386
  %v1397 = vmul.f32 %v1262, %v1386
  %v1398 = vmul.f32 %v1263, %v1386
  %v1399 = vmul.f32 %v1264, %v1386
  %v1400 = vmul.f32 %v1265, %v1386
  %v1401 = vmul.f32 %v1266, %v1386
  %v1402 = vmul.f32 %v1267, %v1386
  %v1403 = vmul.f32 %v1268, %v1386
  %v1404 = vmul.f32 %v1269, %v1386
  %v1405 = vmul.f32 %v1270, %v1386
  %v1406 = vmul.f32 %v1271, %v1386
  %v1407 = vmul.f32 %v1272, %v1386
  %v1408 = vmul.f32 %v1273, %v1386
  %v1409 = vmul.f32 %v1274, %v1386
  %v1410 = vmul.f32 %v1275, %v1386
  %v1411 = vmul.f32 %v1276, %v1386
  %v1412 = vmul.f32 %v1277, %v1386
  %v1413 = vmul.f32 %v1278, %v1386
  %v1414 = vmul.f32 %v1279, %v1386
  %v1415 = vmul.f32 %v1280, %v1386
  %v1416 = vmul.f32 %v1281, %v1386
  %v1417 = vmul.f32 %v1282, %v1386
  %v1418 = vmul.f32 %v1283, %v1386
  %v1419 = vmul.f32 %v1284, %v1386
  %v1420 = vmul.f32 %v1285, %v1386
  %v1421 = vmul.f32 %v1286, %v1386
  %v1422 = vmul.f32 %v1287, %v1386
  %v1423 = vmul.f32 %v1288, %v1386
  %v1424 = vmul.f32 %v1289, %v1386
  %v1425 = vmul.f32 %v1290, %v1386
  %v1426 = vmul.f32 %v1291, %v1386
  %v1427 = vmul.f32 %v1292, %v1386
  %v1428 = vmul.f32 %v1293, %v1386
  %v1429 = vmul.f32 %v1294, %v1386
  %v1430 = vmul.f32 %v1295, %v1386
  %v1431 = vmul.f32 %v1296, %v1386
  %v1432 = vmul.f32 %v1297, %v1386
  %v1433 = vmul.f32 %v1298, %v1386
  %v1434 = vmul.f32 %v1299, %v1386
  %v1435 = vmul.f32 %v1300, %v1386
  %v1436 = vmul.f32 %v1301, %v1386
  %v1437 = vmul.f32 %v1302, %v1386
  %v1438 = vmul.f32 %v1303, %v1386
  %v1439 = vmul.f32 %v1304, %v1386
  %v1440 = vmul.f32 %v1305, %v1386
  %v1441 = vmul.f32 %v1306, %v1386
  %v1442 = vmul.f32 %v1307, %v1386
  %v1443 = vmul.f32 %v1308, %v1386
  %v1444 = vmul.f32 %v1309, %v1386
  %v1445 = vmul.f32 %v1310, %v1386
  %v1446 = vmul.f32 %v1311, %v1386
  %v1447 = vmul.f32 %v1312, %v1386
  %v1448 = vmul.f32 %v1313, %v1386
  %v1449 = vmul.f32 %v1314, %v1386
  %v1450 = vmul.f32 %v1315, %v1386
  %v1451 = vmul.f32 %v1316, %v1386
  %v1452 = vmul.f32 %v1317, %v1386
  %v1453 = vmul.f32 %v1318, %v1386
  %v1454 = vmul.f32 %v1319, %v1386
  %v1455 = vmul.f32 %v1320, %v1386
  %v1456 = vmul.f32 %v1321, %v1386
  %v1457 = vmul.f32 %v1322, %v1386
  %v1458 = vmul.f32 %v1323, %v1386
  %v1459 = vmul.f32 %v1324, %v1386
  %v1460 = vmul.f32 %v1325, %v1386
  %v1461 = vmul.f32 %v1326, %v1386
  %v1462 = vmul.f32 %v1327, %v1386
  %v1463 = vmul.f32 %v1328, %v1386
  %v1464 = vmul.f32 %v1329, %v1386
  %v1465 = vmul.f32 %v1330, %v1386
  %v1466 = vmul.f32 %v1331, %v1386
  %v1467 = vmul.f32 %v1332, %v1386
  %v1468 = vmul.f32 %v1333, %v1386
  %v1469 = vmul.f32 %v1334, %v1386
  %v1470 = vmul.f32 %v1335, %v1386
  %v1471 = vmul.f32 %v1336, %v1386
  %v1472 = vmul.f32 %v1337, %v1386
  %v1473 = vmul.f32 %v1338, %v1386
  %v1474 = vmul.f32 %v1339, %v1386
  %v1475 = vmul.f32 %v1340, %v1386
  %v1476 = vmul.f32 %v1341, %v1386
  %v1477 = vmul.f32 %v1342, %v1386
  %v1478 = vmul.f32 %v1343, %v1386
  %v1479 = vmul.f32 %v1344, %v1386
  %v1480 = vmul.f32 %v1345, %v1386
  %v1481 = vmul.f32 %v1346, %v1386
  %v1482 = vmul.f32 %v1347, %v1386
  %v1483 = vmul.f32 %v1348, %v1386
  %v1484 = vmul.f32 %v1349, %v1386
  %v1485 = vmul.f32 %v1350, %v1386
  %v1486 = vmul.f32 %v1351, %v1386
  %v1487 = vmul.f32 %v1352, %v1386
  %v1488 = vmul.f32 %v1353, %v1386
  %v1489 = vmul.f32 %v1354, %v1386
  %v1490 = vmul.f32 %v1355, %v1386
  %v1491 = vmul.f32 %v1356, %v1386
  %v1492 = vmul.f32 %v1357, %v1386
  %v1493 = vmul.f32 %v1358, %v1386
  %v1494 = vmul.f32 %v1359, %v1386
  %v1495 = vmul.f32 %v1360, %v1386
  %v1496 = vmul.f32 %v1361, %v1386
  %v1497 = vmul.f32 %v1362, %v1386
  %v1498 = vmul.f32 %v1363, %v1386
  %v1499 = vmul.f32 %v1364, %v1386
  %v1500 = vmul.f32 %v1365, %v1386
  %v1501 = vmul.f32 %v1366, %v1386
  %v1502 = vmul.f32 %v1367, %v1386
  %v1503 = vmul.f32 %v1368, %v1386
  %v1504 = vmul.f32 %v1369, %v1386
  %v1505 = vmul.f32 %v1370, %v1386
  %v1506 = vmul.f32 %v1371, %v1386
  %v1507 = vmul.f32 %v1372, %v1386
  %v1508 = vmul.f32 %v1373, %v1386
  %v1509 = vmul.f32 %v1374, %v1386
  %v1510 = vmul.f32 %v1375, %v1386
  %v1511 = vmul.f32 %v1376, %v1386
  %v1512 = vmul.f32 %v1377, %v1386
  %v1513 = vmul.f32 %v1378, %v1386
  %v1514 = vmul.f32 %v1379, %v1386
  %v1515 = vmul.f32 %v1380, %v1386
  %vm1516 = vcmask 523264
  %v1517 = vsel %vm1516, %v1388, 0.0
  %1518 = vadd.xlane.f32.xlu0 %v1517
  %v1519 = vpop.xlane.xlu0 %1518
  %v1520 = vsel %vm1516, %v1389, 0.0
  %1521 = vadd.xlane.f32.xlu0 %v1520
  %v1522 = vpop.xlane.xlu0 %1521
  %v1523 = vsel %vm1516, %v1390, 0.0
  %1524 = vadd.xlane.f32.xlu0 %v1523
  %v1525 = vpop.xlane.xlu0 %1524
  %v1526 = vsel %vm1516, %v1391, 0.0
  %1527 = vadd.xlane.f32.xlu0 %v1526
  %v1528 = vpop.xlane.xlu0 %1527
  %v1529 = vsel %vm1516, %v1392, 0.0
  %1530 = vadd.xlane.f32.xlu0 %v1529
  %v1531 = vpop.xlane.xlu0 %1530
  %v1532 = vsel %vm1516, %v1393, 0.0
  %1533 = vadd.xlane.f32.xlu0 %v1532
  %v1534 = vpop.xlane.xlu0 %1533
  %v1535 = vsel %vm1516, %v1394, 0.0
  %1536 = vadd.xlane.f32.xlu0 %v1535
  %v1537 = vpop.xlane.xlu0 %1536
  %v1538 = vsel %vm1516, %v1395, 0.0
  %1539 = vadd.xlane.f32.xlu0 %v1538
  %v1540 = vpop.xlane.xlu0 %1539
  %v1541 = vsel %vm1516, %v1396, 0.0
  %1542 = vadd.xlane.f32.xlu0 %v1541
  %v1543 = vpop.xlane.xlu0 %1542
  %v1544 = vsel %vm1516, %v1397, 0.0
  %1545 = vadd.xlane.f32.xlu0 %v1544
  %v1546 = vpop.xlane.xlu0 %1545
  %v1547 = vsel %vm1516, %v1398, 0.0
  %1548 = vadd.xlane.f32.xlu0 %v1547
  %v1549 = vpop.xlane.xlu0 %1548
  %v1550 = vsel %vm1516, %v1399, 0.0
  %1551 = vadd.xlane.f32.xlu0 %v1550
  %v1552 = vpop.xlane.xlu0 %1551
  %v1553 = vsel %vm1516, %v1400, 0.0
  %1554 = vadd.xlane.f32.xlu0 %v1553
  %v1555 = vpop.xlane.xlu0 %1554
  %v1556 = vsel %vm1516, %v1401, 0.0
  %1557 = vadd.xlane.f32.xlu0 %v1556
  %v1558 = vpop.xlane.xlu0 %1557
  %v1559 = vsel %vm1516, %v1402, 0.0
  %1560 = vadd.xlane.f32.xlu0 %v1559
  %v1561 = vpop.xlane.xlu0 %1560
  %v1562 = vsel %vm1516, %v1403, 0.0
  %1563 = vadd.xlane.f32.xlu0 %v1562
  %v1564 = vpop.xlane.xlu0 %1563
  %v1565 = vsel %vm1516, %v1404, 0.0
  %1566 = vadd.xlane.f32.xlu0 %v1565
  %v1567 = vpop.xlane.xlu0 %1566
  %v1568 = vsel %vm1516, %v1405, 0.0
  %1569 = vadd.xlane.f32.xlu0 %v1568
  %v1570 = vpop.xlane.xlu0 %1569
  %v1571 = vsel %vm1516, %v1406, 0.0
  %1572 = vadd.xlane.f32.xlu0 %v1571
  %v1573 = vpop.xlane.xlu0 %1572
  %v1574 = vsel %vm1516, %v1407, 0.0
  %1575 = vadd.xlane.f32.xlu0 %v1574
  %v1576 = vpop.xlane.xlu0 %1575
  %v1577 = vsel %vm1516, %v1408, 0.0
  %1578 = vadd.xlane.f32.xlu0 %v1577
  %v1579 = vpop.xlane.xlu0 %1578
  %v1580 = vsel %vm1516, %v1409, 0.0
  %1581 = vadd.xlane.f32.xlu0 %v1580
  %v1582 = vpop.xlane.xlu0 %1581
  %v1583 = vsel %vm1516, %v1410, 0.0
  %1584 = vadd.xlane.f32.xlu0 %v1583
  %v1585 = vpop.xlane.xlu0 %1584
  %v1586 = vsel %vm1516, %v1411, 0.0
  %1587 = vadd.xlane.f32.xlu0 %v1586
  %v1588 = vpop.xlane.xlu0 %1587
  %v1589 = vsel %vm1516, %v1412, 0.0
  %1590 = vadd.xlane.f32.xlu0 %v1589
  %v1591 = vpop.xlane.xlu0 %1590
  %v1592 = vsel %vm1516, %v1413, 0.0
  %1593 = vadd.xlane.f32.xlu0 %v1592
  %v1594 = vpop.xlane.xlu0 %1593
  %v1595 = vsel %vm1516, %v1414, 0.0
  %1596 = vadd.xlane.f32.xlu0 %v1595
  %v1597 = vpop.xlane.xlu0 %1596
  %v1598 = vsel %vm1516, %v1415, 0.0
  %1599 = vadd.xlane.f32.xlu0 %v1598
  %v1600 = vpop.xlane.xlu0 %1599
  %v1601 = vsel %vm1516, %v1416, 0.0
  %1602 = vadd.xlane.f32.xlu0 %v1601
  %v1603 = vpop.xlane.xlu0 %1602
  %v1604 = vsel %vm1516, %v1417, 0.0
  %1605 = vadd.xlane.f32.xlu0 %v1604
  %v1606 = vpop.xlane.xlu0 %1605
  %v1607 = vsel %vm1516, %v1418, 0.0
  %1608 = vadd.xlane.f32.xlu0 %v1607
  %v1609 = vpop.xlane.xlu0 %1608
  %v1610 = vsel %vm1516, %v1419, 0.0
  %1611 = vadd.xlane.f32.xlu0 %v1610
  %v1612 = vpop.xlane.xlu0 %1611
  %v1613 = vsel %vm1516, %v1420, 0.0
  %1614 = vadd.xlane.f32.xlu0 %v1613
  %v1615 = vpop.xlane.xlu0 %1614
  %v1616 = vsel %vm1516, %v1421, 0.0
  %1617 = vadd.xlane.f32.xlu0 %v1616
  %v1618 = vpop.xlane.xlu0 %1617
  %v1619 = vsel %vm1516, %v1422, 0.0
  %1620 = vadd.xlane.f32.xlu0 %v1619
  %v1621 = vpop.xlane.xlu0 %1620
  %v1622 = vsel %vm1516, %v1423, 0.0
  %1623 = vadd.xlane.f32.xlu0 %v1622
  %v1624 = vpop.xlane.xlu0 %1623
  %v1625 = vsel %vm1516, %v1424, 0.0
  %1626 = vadd.xlane.f32.xlu0 %v1625
  %v1627 = vpop.xlane.xlu0 %1626
  %v1628 = vsel %vm1516, %v1425, 0.0
  %1629 = vadd.xlane.f32.xlu0 %v1628
  %v1630 = vpop.xlane.xlu0 %1629
  %v1631 = vsel %vm1516, %v1426, 0.0
  %1632 = vadd.xlane.f32.xlu0 %v1631
  %v1633 = vpop.xlane.xlu0 %1632
  %v1634 = vsel %vm1516, %v1427, 0.0
  %1635 = vadd.xlane.f32.xlu0 %v1634
  %v1636 = vpop.xlane.xlu0 %1635
  %v1637 = vsel %vm1516, %v1428, 0.0
  %1638 = vadd.xlane.f32.xlu0 %v1637
  %v1639 = vpop.xlane.xlu0 %1638
  %v1640 = vsel %vm1516, %v1429, 0.0
  %1641 = vadd.xlane.f32.xlu0 %v1640
  %v1642 = vpop.xlane.xlu0 %1641
  %v1643 = vsel %vm1516, %v1430, 0.0
  %1644 = vadd.xlane.f32.xlu0 %v1643
  %v1645 = vpop.xlane.xlu0 %1644
  %v1646 = vsel %vm1516, %v1431, 0.0
  %1647 = vadd.xlane.f32.xlu0 %v1646
  %v1648 = vpop.xlane.xlu0 %1647
  %v1649 = vsel %vm1516, %v1432, 0.0
  %1650 = vadd.xlane.f32.xlu0 %v1649
  %v1651 = vpop.xlane.xlu0 %1650
  %v1652 = vsel %vm1516, %v1433, 0.0
  %1653 = vadd.xlane.f32.xlu0 %v1652
  %v1654 = vpop.xlane.xlu0 %1653
  %v1655 = vsel %vm1516, %v1434, 0.0
  %1656 = vadd.xlane.f32.xlu0 %v1655
  %v1657 = vpop.xlane.xlu0 %1656
  %v1658 = vsel %vm1516, %v1435, 0.0
  %1659 = vadd.xlane.f32.xlu0 %v1658
  %v1660 = vpop.xlane.xlu0 %1659
  %v1661 = vsel %vm1516, %v1436, 0.0
  %1662 = vadd.xlane.f32.xlu0 %v1661
  %v1663 = vpop.xlane.xlu0 %1662
  %v1664 = vsel %vm1516, %v1437, 0.0
  %1665 = vadd.xlane.f32.xlu0 %v1664
  %v1666 = vpop.xlane.xlu0 %1665
  %v1667 = vsel %vm1516, %v1438, 0.0
  %1668 = vadd.xlane.f32.xlu0 %v1667
  %v1669 = vpop.xlane.xlu0 %1668
  %v1670 = vsel %vm1516, %v1439, 0.0
  %1671 = vadd.xlane.f32.xlu0 %v1670
  %v1672 = vpop.xlane.xlu0 %1671
  %v1673 = vsel %vm1516, %v1440, 0.0
  %1674 = vadd.xlane.f32.xlu0 %v1673
  %v1675 = vpop.xlane.xlu0 %1674
  %v1676 = vsel %vm1516, %v1441, 0.0
  %1677 = vadd.xlane.f32.xlu0 %v1676
  %v1678 = vpop.xlane.xlu0 %1677
  %v1679 = vsel %vm1516, %v1442, 0.0
  %1680 = vadd.xlane.f32.xlu0 %v1679
  %v1681 = vpop.xlane.xlu0 %1680
  %v1682 = vsel %vm1516, %v1443, 0.0
  %1683 = vadd.xlane.f32.xlu0 %v1682
  %v1684 = vpop.xlane.xlu0 %1683
  %v1685 = vsel %vm1516, %v1444, 0.0
  %1686 = vadd.xlane.f32.xlu0 %v1685
  %v1687 = vpop.xlane.xlu0 %1686
  %v1688 = vsel %vm1516, %v1445, 0.0
  %1689 = vadd.xlane.f32.xlu0 %v1688
  %v1690 = vpop.xlane.xlu0 %1689
  %v1691 = vsel %vm1516, %v1446, 0.0
  %1692 = vadd.xlane.f32.xlu0 %v1691
  %v1693 = vpop.xlane.xlu0 %1692
  %v1694 = vsel %vm1516, %v1447, 0.0
  %1695 = vadd.xlane.f32.xlu0 %v1694
  %v1696 = vpop.xlane.xlu0 %1695
  %v1697 = vsel %vm1516, %v1448, 0.0
  %1698 = vadd.xlane.f32.xlu0 %v1697
  %v1699 = vpop.xlane.xlu0 %1698
  %v1700 = vsel %vm1516, %v1449, 0.0
  %1701 = vadd.xlane.f32.xlu0 %v1700
  %v1702 = vpop.xlane.xlu0 %1701
  %v1703 = vsel %vm1516, %v1450, 0.0
  %1704 = vadd.xlane.f32.xlu0 %v1703
  %v1705 = vpop.xlane.xlu0 %1704
  %v1706 = vsel %vm1516, %v1451, 0.0
  %1707 = vadd.xlane.f32.xlu0 %v1706
  %v1708 = vpop.xlane.xlu0 %1707
  %v1709 = vsel %vm1516, %v1452, 0.0
  %1710 = vadd.xlane.f32.xlu0 %v1709
  %v1711 = vpop.xlane.xlu0 %1710
  %v1712 = vsel %vm1516, %v1453, 0.0
  %1713 = vadd.xlane.f32.xlu0 %v1712
  %v1714 = vpop.xlane.xlu0 %1713
  %v1715 = vsel %vm1516, %v1454, 0.0
  %1716 = vadd.xlane.f32.xlu0 %v1715
  %v1717 = vpop.xlane.xlu0 %1716
  %v1718 = vsel %vm1516, %v1455, 0.0
  %1719 = vadd.xlane.f32.xlu0 %v1718
  %v1720 = vpop.xlane.xlu0 %1719
  %v1721 = vsel %vm1516, %v1456, 0.0
  %1722 = vadd.xlane.f32.xlu0 %v1721
  %v1723 = vpop.xlane.xlu0 %1722
  %v1724 = vsel %vm1516, %v1457, 0.0
  %1725 = vadd.xlane.f32.xlu0 %v1724
  %v1726 = vpop.xlane.xlu0 %1725
  %v1727 = vsel %vm1516, %v1458, 0.0
  %1728 = vadd.xlane.f32.xlu0 %v1727
  %v1729 = vpop.xlane.xlu0 %1728
  %v1730 = vsel %vm1516, %v1459, 0.0
  %1731 = vadd.xlane.f32.xlu0 %v1730
  %v1732 = vpop.xlane.xlu0 %1731
  %v1733 = vsel %vm1516, %v1460, 0.0
  %1734 = vadd.xlane.f32.xlu0 %v1733
  %v1735 = vpop.xlane.xlu0 %1734
  %v1736 = vsel %vm1516, %v1461, 0.0
  %1737 = vadd.xlane.f32.xlu0 %v1736
  %v1738 = vpop.xlane.xlu0 %1737
  %v1739 = vsel %vm1516, %v1462, 0.0
  %1740 = vadd.xlane.f32.xlu0 %v1739
  %v1741 = vpop.xlane.xlu0 %1740
  %v1742 = vsel %vm1516, %v1463, 0.0
  %1743 = vadd.xlane.f32.xlu0 %v1742
  %v1744 = vpop.xlane.xlu0 %1743
  %v1745 = vsel %vm1516, %v1464, 0.0
  %1746 = vadd.xlane.f32.xlu0 %v1745
  %v1747 = vpop.xlane.xlu0 %1746
  %v1748 = vsel %vm1516, %v1465, 0.0
  %1749 = vadd.xlane.f32.xlu0 %v1748
  %v1750 = vpop.xlane.xlu0 %1749
  %v1751 = vsel %vm1516, %v1466, 0.0
  %1752 = vadd.xlane.f32.xlu0 %v1751
  %v1753 = vpop.xlane.xlu0 %1752
  %v1754 = vsel %vm1516, %v1467, 0.0
  %1755 = vadd.xlane.f32.xlu0 %v1754
  %v1756 = vpop.xlane.xlu0 %1755
  %v1757 = vsel %vm1516, %v1468, 0.0
  %1758 = vadd.xlane.f32.xlu0 %v1757
  %v1759 = vpop.xlane.xlu0 %1758
  %v1760 = vsel %vm1516, %v1469, 0.0
  %1761 = vadd.xlane.f32.xlu0 %v1760
  %v1762 = vpop.xlane.xlu0 %1761
  %v1763 = vsel %vm1516, %v1470, 0.0
  %1764 = vadd.xlane.f32.xlu0 %v1763
  %v1765 = vpop.xlane.xlu0 %1764
  %v1766 = vsel %vm1516, %v1471, 0.0
  %1767 = vadd.xlane.f32.xlu0 %v1766
  %v1768 = vpop.xlane.xlu0 %1767
  %v1769 = vsel %vm1516, %v1472, 0.0
  %1770 = vadd.xlane.f32.xlu0 %v1769
  %v1771 = vpop.xlane.xlu0 %1770
  %v1772 = vsel %vm1516, %v1473, 0.0
  %1773 = vadd.xlane.f32.xlu0 %v1772
  %v1774 = vpop.xlane.xlu0 %1773
  %v1775 = vsel %vm1516, %v1474, 0.0
  %1776 = vadd.xlane.f32.xlu0 %v1775
  %v1777 = vpop.xlane.xlu0 %1776
  %v1778 = vsel %vm1516, %v1475, 0.0
  %1779 = vadd.xlane.f32.xlu0 %v1778
  %v1780 = vpop.xlane.xlu0 %1779
  %v1781 = vsel %vm1516, %v1476, 0.0
  %1782 = vadd.xlane.f32.xlu0 %v1781
  %v1783 = vpop.xlane.xlu0 %1782
  %v1784 = vsel %vm1516, %v1477, 0.0
  %1785 = vadd.xlane.f32.xlu0 %v1784
  %v1786 = vpop.xlane.xlu0 %1785
  %v1787 = vsel %vm1516, %v1478, 0.0
  %1788 = vadd.xlane.f32.xlu0 %v1787
  %v1789 = vpop.xlane.xlu0 %1788
  %v1790 = vsel %vm1516, %v1479, 0.0
  %1791 = vadd.xlane.f32.xlu0 %v1790
  %v1792 = vpop.xlane.xlu0 %1791
  %v1793 = vsel %vm1516, %v1480, 0.0
  %1794 = vadd.xlane.f32.xlu0 %v1793
  %v1795 = vpop.xlane.xlu0 %1794
  %v1796 = vsel %vm1516, %v1481, 0.0
  %1797 = vadd.xlane.f32.xlu0 %v1796
  %v1798 = vpop.xlane.xlu0 %1797
  %v1799 = vsel %vm1516, %v1482, 0.0
  %1800 = vadd.xlane.f32.xlu0 %v1799
  %v1801 = vpop.xlane.xlu0 %1800
  %v1802 = vsel %vm1516, %v1483, 0.0
  %1803 = vadd.xlane.f32.xlu0 %v1802
  %v1804 = vpop.xlane.xlu0 %1803
  %v1805 = vsel %vm1516, %v1484, 0.0
  %1806 = vadd.xlane.f32.xlu0 %v1805
  %v1807 = vpop.xlane.xlu0 %1806
  %v1808 = vsel %vm1516, %v1485, 0.0
  %1809 = vadd.xlane.f32.xlu0 %v1808
  %v1810 = vpop.xlane.xlu0 %1809
  %v1811 = vsel %vm1516, %v1486, 0.0
  %1812 = vadd.xlane.f32.xlu0 %v1811
  %v1813 = vpop.xlane.xlu0 %1812
  %v1814 = vsel %vm1516, %v1487, 0.0
  %1815 = vadd.xlane.f32.xlu0 %v1814
  %v1816 = vpop.xlane.xlu0 %1815
  %v1817 = vsel %vm1516, %v1488, 0.0
  %1818 = vadd.xlane.f32.xlu0 %v1817
  %v1819 = vpop.xlane.xlu0 %1818
  %v1820 = vsel %vm1516, %v1489, 0.0
  %1821 = vadd.xlane.f32.xlu0 %v1820
  %v1822 = vpop.xlane.xlu0 %1821
  %v1823 = vsel %vm1516, %v1490, 0.0
  %1824 = vadd.xlane.f32.xlu0 %v1823
  %v1825 = vpop.xlane.xlu0 %1824
  %v1826 = vsel %vm1516, %v1491, 0.0
  %1827 = vadd.xlane.f32.xlu0 %v1826
  %v1828 = vpop.xlane.xlu0 %1827
  %v1829 = vsel %vm1516, %v1492, 0.0
  %1830 = vadd.xlane.f32.xlu0 %v1829
  %v1831 = vpop.xlane.xlu0 %1830
  %v1832 = vsel %vm1516, %v1493, 0.0
  %1833 = vadd.xlane.f32.xlu0 %v1832
  %v1834 = vpop.xlane.xlu0 %1833
  %v1835 = vsel %vm1516, %v1494, 0.0
  %1836 = vadd.xlane.f32.xlu0 %v1835
  %v1837 = vpop.xlane.xlu0 %1836
  %v1838 = vsel %vm1516, %v1495, 0.0
  %1839 = vadd.xlane.f32.xlu0 %v1838
  %v1840 = vpop.xlane.xlu0 %1839
  %v1841 = vsel %vm1516, %v1496, 0.0
  %1842 = vadd.xlane.f32.xlu0 %v1841
  %v1843 = vpop.xlane.xlu0 %1842
  %v1844 = vsel %vm1516, %v1497, 0.0
  %1845 = vadd.xlane.f32.xlu0 %v1844
  %v1846 = vpop.xlane.xlu0 %1845
  %v1847 = vsel %vm1516, %v1498, 0.0
  %1848 = vadd.xlane.f32.xlu0 %v1847
  %v1849 = vpop.xlane.xlu0 %1848
  %v1850 = vsel %vm1516, %v1499, 0.0
  %1851 = vadd.xlane.f32.xlu0 %v1850
  %v1852 = vpop.xlane.xlu0 %1851
  %v1853 = vsel %vm1516, %v1500, 0.0
  %1854 = vadd.xlane.f32.xlu0 %v1853
  %v1855 = vpop.xlane.xlu0 %1854
  %v1856 = vsel %vm1516, %v1501, 0.0
  %1857 = vadd.xlane.f32.xlu0 %v1856
  %v1858 = vpop.xlane.xlu0 %1857
  %v1859 = vsel %vm1516, %v1502, 0.0
  %1860 = vadd.xlane.f32.xlu0 %v1859
  %v1861 = vpop.xlane.xlu0 %1860
  %v1862 = vsel %vm1516, %v1503, 0.0
  %1863 = vadd.xlane.f32.xlu0 %v1862
  %v1864 = vpop.xlane.xlu0 %1863
  %v1865 = vsel %vm1516, %v1504, 0.0
  %1866 = vadd.xlane.f32.xlu0 %v1865
  %v1867 = vpop.xlane.xlu0 %1866
  %v1868 = vsel %vm1516, %v1505, 0.0
  %1869 = vadd.xlane.f32.xlu0 %v1868
  %v1870 = vpop.xlane.xlu0 %1869
  %v1871 = vsel %vm1516, %v1506, 0.0
  %1872 = vadd.xlane.f32.xlu0 %v1871
  %v1873 = vpop.xlane.xlu0 %1872
  %v1874 = vsel %vm1516, %v1507, 0.0
  %1875 = vadd.xlane.f32.xlu0 %v1874
  %v1876 = vpop.xlane.xlu0 %1875
  %v1877 = vsel %vm1516, %v1508, 0.0
  %1878 = vadd.xlane.f32.xlu0 %v1877
  %v1879 = vpop.xlane.xlu0 %1878
  %v1880 = vsel %vm1516, %v1509, 0.0
  %1881 = vadd.xlane.f32.xlu0 %v1880
  %v1882 = vpop.xlane.xlu0 %1881
  %v1883 = vsel %vm1516, %v1510, 0.0
  %1884 = vadd.xlane.f32.xlu0 %v1883
  %v1885 = vpop.xlane.xlu0 %1884
  %v1886 = vsel %vm1516, %v1511, 0.0
  %1887 = vadd.xlane.f32.xlu0 %v1886
  %v1888 = vpop.xlane.xlu0 %1887
  %v1889 = vsel %vm1516, %v1512, 0.0
  %1890 = vadd.xlane.f32.xlu0 %v1889
  %v1891 = vpop.xlane.xlu0 %1890
  %v1892 = vsel %vm1516, %v1513, 0.0
  %1893 = vadd.xlane.f32.xlu0 %v1892
  %v1894 = vpop.xlane.xlu0 %1893
  %v1895 = vsel %vm1516, %v1514, 0.0
  %1896 = vadd.xlane.f32.xlu0 %v1895
  %v1897 = vpop.xlane.xlu0 %1896
  %v1898 = vsel %vm1516, %v1515, 0.0
  %1899 = vadd.xlane.f32.xlu0 %v1898
  %v1900 = vpop.xlane.xlu0 %1899
  %v1901 = vld [vmem:[#allocation2] sm:$0x1]
  %v1903 = vlaneseq
  %v1904 = vshrl.u32 %v1903, 7
  %v1905 = vsub.s32 0, %v1904
  %v1906 = vrot.slane %v1901, %v1905
  %v1908 = vadd.f32 %v1519, %v1906
  %v1909 = vadd.f32 %v1522, %v1906
  %v1910 = vadd.f32 %v1525, %v1906
  %v1911 = vadd.f32 %v1528, %v1906
  %v1912 = vadd.f32 %v1531, %v1906
  %v1913 = vadd.f32 %v1534, %v1906
  %v1914 = vadd.f32 %v1537, %v1906
  %v1915 = vadd.f32 %v1540, %v1906
  %v1916 = vadd.f32 %v1543, %v1906
  %v1917 = vadd.f32 %v1546, %v1906
  %v1918 = vadd.f32 %v1549, %v1906
  %v1919 = vadd.f32 %v1552, %v1906
  %v1920 = vadd.f32 %v1555, %v1906
  %v1921 = vadd.f32 %v1558, %v1906
  %v1922 = vadd.f32 %v1561, %v1906
  %v1923 = vadd.f32 %v1564, %v1906
  %v1924 = vadd.f32 %v1567, %v1906
  %v1925 = vadd.f32 %v1570, %v1906
  %v1926 = vadd.f32 %v1573, %v1906
  %v1927 = vadd.f32 %v1576, %v1906
  %v1928 = vadd.f32 %v1579, %v1906
  %v1929 = vadd.f32 %v1582, %v1906
  %v1930 = vadd.f32 %v1585, %v1906
  %v1931 = vadd.f32 %v1588, %v1906
  %v1932 = vadd.f32 %v1591, %v1906
  %v1933 = vadd.f32 %v1594, %v1906
  %v1934 = vadd.f32 %v1597, %v1906
  %v1935 = vadd.f32 %v1600, %v1906
  %v1936 = vadd.f32 %v1603, %v1906
  %v1937 = vadd.f32 %v1606, %v1906
  %v1938 = vadd.f32 %v1609, %v1906
  %v1939 = vadd.f32 %v1612, %v1906
  %v1940 = vadd.f32 %v1615, %v1906
  %v1941 = vadd.f32 %v1618, %v1906
  %v1942 = vadd.f32 %v1621, %v1906
  %v1943 = vadd.f32 %v1624, %v1906
  %v1944 = vadd.f32 %v1627, %v1906
  %v1945 = vadd.f32 %v1630, %v1906
  %v1946 = vadd.f32 %v1633, %v1906
  %v1947 = vadd.f32 %v1636, %v1906
  %v1948 = vadd.f32 %v1639, %v1906
  %v1949 = vadd.f32 %v1642, %v1906
  %v1950 = vadd.f32 %v1645, %v1906
  %v1951 = vadd.f32 %v1648, %v1906
  %v1952 = vadd.f32 %v1651, %v1906
  %v1953 = vadd.f32 %v1654, %v1906
  %v1954 = vadd.f32 %v1657, %v1906
  %v1955 = vadd.f32 %v1660, %v1906
  %v1956 = vadd.f32 %v1663, %v1906
  %v1957 = vadd.f32 %v1666, %v1906
  %v1958 = vadd.f32 %v1669, %v1906
  %v1959 = vadd.f32 %v1672, %v1906
  %v1960 = vadd.f32 %v1675, %v1906
  %v1961 = vadd.f32 %v1678, %v1906
  %v1962 = vadd.f32 %v1681, %v1906
  %v1963 = vadd.f32 %v1684, %v1906
  %v1964 = vadd.f32 %v1687, %v1906
  %v1965 = vadd.f32 %v1690, %v1906
  %v1966 = vadd.f32 %v1693, %v1906
  %v1967 = vadd.f32 %v1696, %v1906
  %v1968 = vadd.f32 %v1699, %v1906
  %v1969 = vadd.f32 %v1702, %v1906
  %v1970 = vadd.f32 %v1705, %v1906
  %v1971 = vadd.f32 %v1708, %v1906
  %v1972 = vadd.f32 %v1711, %v1906
  %v1973 = vadd.f32 %v1714, %v1906
  %v1974 = vadd.f32 %v1717, %v1906
  %v1975 = vadd.f32 %v1720, %v1906
  %v1976 = vadd.f32 %v1723, %v1906
  %v1977 = vadd.f32 %v1726, %v1906
  %v1978 = vadd.f32 %v1729, %v1906
  %v1979 = vadd.f32 %v1732, %v1906
  %v1980 = vadd.f32 %v1735, %v1906
  %v1981 = vadd.f32 %v1738, %v1906
  %v1982 = vadd.f32 %v1741, %v1906
  %v1983 = vadd.f32 %v1744, %v1906
  %v1984 = vadd.f32 %v1747, %v1906
  %v1985 = vadd.f32 %v1750, %v1906
  %v1986 = vadd.f32 %v1753, %v1906
  %v1987 = vadd.f32 %v1756, %v1906
  %v1988 = vadd.f32 %v1759, %v1906
  %v1989 = vadd.f32 %v1762, %v1906
  %v1990 = vadd.f32 %v1765, %v1906
  %v1991 = vadd.f32 %v1768, %v1906
  %v1992 = vadd.f32 %v1771, %v1906
  %v1993 = vadd.f32 %v1774, %v1906
  %v1994 = vadd.f32 %v1777, %v1906
  %v1995 = vadd.f32 %v1780, %v1906
  %v1996 = vadd.f32 %v1783, %v1906
  %v1997 = vadd.f32 %v1786, %v1906
  %v1998 = vadd.f32 %v1789, %v1906
  %v1999 = vadd.f32 %v1792, %v1906
  %v2000 = vadd.f32 %v1795, %v1906
  %v2001 = vadd.f32 %v1798, %v1906
  %v2002 = vadd.f32 %v1801, %v1906
  %v2003 = vadd.f32 %v1804, %v1906
  %v2004 = vadd.f32 %v1807, %v1906
  %v2005 = vadd.f32 %v1810, %v1906
  %v2006 = vadd.f32 %v1813, %v1906
  %v2007 = vadd.f32 %v1816, %v1906
  %v2008 = vadd.f32 %v1819, %v1906
  %v2009 = vadd.f32 %v1822, %v1906
  %v2010 = vadd.f32 %v1825, %v1906
  %v2011 = vadd.f32 %v1828, %v1906
  %v2012 = vadd.f32 %v1831, %v1906
  %v2013 = vadd.f32 %v1834, %v1906
  %v2014 = vadd.f32 %v1837, %v1906
  %v2015 = vadd.f32 %v1840, %v1906
  %v2016 = vadd.f32 %v1843, %v1906
  %v2017 = vadd.f32 %v1846, %v1906
  %v2018 = vadd.f32 %v1849, %v1906
  %v2019 = vadd.f32 %v1852, %v1906
  %v2020 = vadd.f32 %v1855, %v1906
  %v2021 = vadd.f32 %v1858, %v1906
  %v2022 = vadd.f32 %v1861, %v1906
  %v2023 = vadd.f32 %v1864, %v1906
  %v2024 = vadd.f32 %v1867, %v1906
  %v2025 = vadd.f32 %v1870, %v1906
  %v2026 = vadd.f32 %v1873, %v1906
  %v2027 = vadd.f32 %v1876, %v1906
  %v2028 = vadd.f32 %v1879, %v1906
  %v2029 = vadd.f32 %v1882, %v1906
  %v2030 = vadd.f32 %v1885, %v1906
  %v2031 = vadd.f32 %v1888, %v1906
  %v2032 = vadd.f32 %v1891, %v1906
  %v2033 = vadd.f32 %v1894, %v1906
  %v2034 = vadd.f32 %v1897, %v1906
  %v2035 = vadd.f32 %v1900, %v1906
  %v2036 = vsub.f32 0.0, %v1908
  %v2037 = vsub.f32 0.0, %v1909
  %v2038 = vsub.f32 0.0, %v1910
  %v2039 = vsub.f32 0.0, %v1911
  %v2040 = vsub.f32 0.0, %v1912
  %v2041 = vsub.f32 0.0, %v1913
  %v2042 = vsub.f32 0.0, %v1914
  %v2043 = vsub.f32 0.0, %v1915
  %v2044 = vsub.f32 0.0, %v1916
  %v2045 = vsub.f32 0.0, %v1917
  %v2046 = vsub.f32 0.0, %v1918
  %v2047 = vsub.f32 0.0, %v1919
  %v2048 = vsub.f32 0.0, %v1920
  %v2049 = vsub.f32 0.0, %v1921
  %v2050 = vsub.f32 0.0, %v1922
  %v2051 = vsub.f32 0.0, %v1923
  %v2052 = vsub.f32 0.0, %v1924
  %v2053 = vsub.f32 0.0, %v1925
  %v2054 = vsub.f32 0.0, %v1926
  %v2055 = vsub.f32 0.0, %v1927
  %v2056 = vsub.f32 0.0, %v1928
  %v2057 = vsub.f32 0.0, %v1929
  %v2058 = vsub.f32 0.0, %v1930
  %v2059 = vsub.f32 0.0, %v1931
  %v2060 = vsub.f32 0.0, %v1932
  %v2061 = vsub.f32 0.0, %v1933
  %v2062 = vsub.f32 0.0, %v1934
  %v2063 = vsub.f32 0.0, %v1935
  %v2064 = vsub.f32 0.0, %v1936
  %v2065 = vsub.f32 0.0, %v1937
  %v2066 = vsub.f32 0.0, %v1938
  %v2067 = vsub.f32 0.0, %v1939
  %v2068 = vsub.f32 0.0, %v1940
  %v2069 = vsub.f32 0.0, %v1941
  %v2070 = vsub.f32 0.0, %v1942
  %v2071 = vsub.f32 0.0, %v1943
  %v2072 = vsub.f32 0.0, %v1944
  %v2073 = vsub.f32 0.0, %v1945
  %v2074 = vsub.f32 0.0, %v1946
  %v2075 = vsub.f32 0.0, %v1947
  %v2076 = vsub.f32 0.0, %v1948
  %v2077 = vsub.f32 0.0, %v1949
  %v2078 = vsub.f32 0.0, %v1950
  %v2079 = vsub.f32 0.0, %v1951
  %v2080 = vsub.f32 0.0, %v1952
  %v2081 = vsub.f32 0.0, %v1953
  %v2082 = vsub.f32 0.0, %v1954
  %v2083 = vsub.f32 0.0, %v1955
  %v2084 = vsub.f32 0.0, %v1956
  %v2085 = vsub.f32 0.0, %v1957
  %v2086 = vsub.f32 0.0, %v1958
  %v2087 = vsub.f32 0.0, %v1959
  %v2088 = vsub.f32 0.0, %v1960
  %v2089 = vsub.f32 0.0, %v1961
  %v2090 = vsub.f32 0.0, %v1962
  %v2091 = vsub.f32 0.0, %v1963
  %v2092 = vsub.f32 0.0, %v1964
  %v2093 = vsub.f32 0.0, %v1965
  %v2094 = vsub.f32 0.0, %v1966
  %v2095 = vsub.f32 0.0, %v1967
  %v2096 = vsub.f32 0.0, %v1968
  %v2097 = vsub.f32 0.0, %v1969
  %v2098 = vsub.f32 0.0, %v1970
  %v2099 = vsub.f32 0.0, %v1971
  %v2100 = vsub.f32 0.0, %v1972
  %v2101 = vsub.f32 0.0, %v1973
  %v2102 = vsub.f32 0.0, %v1974
  %v2103 = vsub.f32 0.0, %v1975
  %v2104 = vsub.f32 0.0, %v1976
  %v2105 = vsub.f32 0.0, %v1977
  %v2106 = vsub.f32 0.0, %v1978
  %v2107 = vsub.f32 0.0, %v1979
  %v2108 = vsub.f32 0.0, %v1980
  %v2109 = vsub.f32 0.0, %v1981
  %v2110 = vsub.f32 0.0, %v1982
  %v2111 = vsub.f32 0.0, %v1983
  %v2112 = vsub.f32 0.0, %v1984
  %v2113 = vsub.f32 0.0, %v1985
  %v2114 = vsub.f32 0.0, %v1986
  %v2115 = vsub.f32 0.0, %v1987
  %v2116 = vsub.f32 0.0, %v1988
  %v2117 = vsub.f32 0.0, %v1989
  %v2118 = vsub.f32 0.0, %v1990
  %v2119 = vsub.f32 0.0, %v1991
  %v2120 = vsub.f32 0.0, %v1992
  %v2121 = vsub.f32 0.0, %v1993
  %v2122 = vsub.f32 0.0, %v1994
  %v2123 = vsub.f32 0.0, %v1995
  %v2124 = vsub.f32 0.0, %v1996
  %v2125 = vsub.f32 0.0, %v1997
  %v2126 = vsub.f32 0.0, %v1998
  %v2127 = vsub.f32 0.0, %v1999
  %v2128 = vsub.f32 0.0, %v2000
  %v2129 = vsub.f32 0.0, %v2001
  %v2130 = vsub.f32 0.0, %v2002
  %v2131 = vsub.f32 0.0, %v2003
  %v2132 = vsub.f32 0.0, %v2004
  %v2133 = vsub.f32 0.0, %v2005
  %v2134 = vsub.f32 0.0, %v2006
  %v2135 = vsub.f32 0.0, %v2007
  %v2136 = vsub.f32 0.0, %v2008
  %v2137 = vsub.f32 0.0, %v2009
  %v2138 = vsub.f32 0.0, %v2010
  %v2139 = vsub.f32 0.0, %v2011
  %v2140 = vsub.f32 0.0, %v2012
  %v2141 = vsub.f32 0.0, %v2013
  %v2142 = vsub.f32 0.0, %v2014
  %v2143 = vsub.f32 0.0, %v2015
  %v2144 = vsub.f32 0.0, %v2016
  %v2145 = vsub.f32 0.0, %v2017
  %v2146 = vsub.f32 0.0, %v2018
  %v2147 = vsub.f32 0.0, %v2019
  %v2148 = vsub.f32 0.0, %v2020
  %v2149 = vsub.f32 0.0, %v2021
  %v2150 = vsub.f32 0.0, %v2022
  %v2151 = vsub.f32 0.0, %v2023
  %v2152 = vsub.f32 0.0, %v2024
  %v2153 = vsub.f32 0.0, %v2025
  %v2154 = vsub.f32 0.0, %v2026
  %v2155 = vsub.f32 0.0, %v2027
  %v2156 = vsub.f32 0.0, %v2028
  %v2157 = vsub.f32 0.0, %v2029
  %v2158 = vsub.f32 0.0, %v2030
  %v2159 = vsub.f32 0.0, %v2031
  %v2160 = vsub.f32 0.0, %v2032
  %v2161 = vsub.f32 0.0, %v2033
  %v2162 = vsub.f32 0.0, %v2034
  %v2163 = vsub.f32 0.0, %v2035
  %v2164 = vmul.f32 %v2036, 1.442695
  %v2165 = vpow.pop %v2164
  %v2166 = vmul.f32 %v2037, 1.442695
  %v2167 = vpow.pop %v2166
  %v2168 = vmul.f32 %v2038, 1.442695
  %v2169 = vpow.pop %v2168
  %v2170 = vmul.f32 %v2039, 1.442695
  %v2171 = vpow.pop %v2170
  %v2172 = vmul.f32 %v2040, 1.442695
  %v2173 = vpow.pop %v2172
  %v2174 = vmul.f32 %v2041, 1.442695
  %v2175 = vpow.pop %v2174
  %v2176 = vmul.f32 %v2042, 1.442695
  %v2177 = vpow.pop %v2176
  %v2178 = vmul.f32 %v2043, 1.442695
  %v2179 = vpow.pop %v2178
  %v2180 = vmul.f32 %v2044, 1.442695
  %v2181 = vpow.pop %v2180
  %v2182 = vmul.f32 %v2045, 1.442695
  %v2183 = vpow.pop %v2182
  %v2184 = vmul.f32 %v2046, 1.442695
  %v2185 = vpow.pop %v2184
  %v2186 = vmul.f32 %v2047, 1.442695
  %v2187 = vpow.pop %v2186
  %v2188 = vmul.f32 %v2048, 1.442695
  %v2189 = vpow.pop %v2188
  %v2190 = vmul.f32 %v2049, 1.442695
  %v2191 = vpow.pop %v2190
  %v2192 = vmul.f32 %v2050, 1.442695
  %v2193 = vpow.pop %v2192
  %v2194 = vmul.f32 %v2051, 1.442695
  %v2195 = vpow.pop %v2194
  %v2196 = vmul.f32 %v2052, 1.442695
  %v2197 = vpow.pop %v2196
  %v2198 = vmul.f32 %v2053, 1.442695
  %v2199 = vpow.pop %v2198
  %v2200 = vmul.f32 %v2054, 1.442695
  %v2201 = vpow.pop %v2200
  %v2202 = vmul.f32 %v2055, 1.442695
  %v2203 = vpow.pop %v2202
  %v2204 = vmul.f32 %v2056, 1.442695
  %v2205 = vpow.pop %v2204
  %v2206 = vmul.f32 %v2057, 1.442695
  %v2207 = vpow.pop %v2206
  %v2208 = vmul.f32 %v2058, 1.442695
  %v2209 = vpow.pop %v2208
  %v2210 = vmul.f32 %v2059, 1.442695
  %v2211 = vpow.pop %v2210
  %v2212 = vmul.f32 %v2060, 1.442695
  %v2213 = vpow.pop %v2212
  %v2214 = vmul.f32 %v2061, 1.442695
  %v2215 = vpow.pop %v2214
  %v2216 = vmul.f32 %v2062, 1.442695
  %v2217 = vpow.pop %v2216
  %v2218 = vmul.f32 %v2063, 1.442695
  %v2219 = vpow.pop %v2218
  %v2220 = vmul.f32 %v2064, 1.442695
  %v2221 = vpow.pop %v2220
  %v2222 = vmul.f32 %v2065, 1.442695
  %v2223 = vpow.pop %v2222
  %v2224 = vmul.f32 %v2066, 1.442695
  %v2225 = vpow.pop %v2224
  %v2226 = vmul.f32 %v2067, 1.442695
  %v2227 = vpow.pop %v2226
  %v2228 = vmul.f32 %v2068, 1.442695
  %v2229 = vpow.pop %v2228
  %v2230 = vmul.f32 %v2069, 1.442695
  %v2231 = vpow.pop %v2230
  %v2232 = vmul.f32 %v2070, 1.442695
  %v2233 = vpow.pop %v2232
  %v2234 = vmul.f32 %v2071, 1.442695
  %v2235 = vpow.pop %v2234
  %v2236 = vmul.f32 %v2072, 1.442695
  %v2237 = vpow.pop %v2236
  %v2238 = vmul.f32 %v2073, 1.442695
  %v2239 = vpow.pop %v2238
  %v2240 = vmul.f32 %v2074, 1.442695
  %v2241 = vpow.pop %v2240
  %v2242 = vmul.f32 %v2075, 1.442695
  %v2243 = vpow.pop %v2242
  %v2244 = vmul.f32 %v2076, 1.442695
  %v2245 = vpow.pop %v2244
  %v2246 = vmul.f32 %v2077, 1.442695
  %v2247 = vpow.pop %v2246
  %v2248 = vmul.f32 %v2078, 1.442695
  %v2249 = vpow.pop %v2248
  %v2250 = vmul.f32 %v2079, 1.442695
  %v2251 = vpow.pop %v2250
  %v2252 = vmul.f32 %v2080, 1.442695
  %v2253 = vpow.pop %v2252
  %v2254 = vmul.f32 %v2081, 1.442695
  %v2255 = vpow.pop %v2254
  %v2256 = vmul.f32 %v2082, 1.442695
  %v2257 = vpow.pop %v2256
  %v2258 = vmul.f32 %v2083, 1.442695
  %v2259 = vpow.pop %v2258
  %v2260 = vmul.f32 %v2084, 1.442695
  %v2261 = vpow.pop %v2260
  %v2262 = vmul.f32 %v2085, 1.442695
  %v2263 = vpow.pop %v2262
  %v2264 = vmul.f32 %v2086, 1.442695
  %v2265 = vpow.pop %v2264
  %v2266 = vmul.f32 %v2087, 1.442695
  %v2267 = vpow.pop %v2266
  %v2268 = vmul.f32 %v2088, 1.442695
  %v2269 = vpow.pop %v2268
  %v2270 = vmul.f32 %v2089, 1.442695
  %v2271 = vpow.pop %v2270
  %v2272 = vmul.f32 %v2090, 1.442695
  %v2273 = vpow.pop %v2272
  %v2274 = vmul.f32 %v2091, 1.442695
  %v2275 = vpow.pop %v2274
  %v2276 = vmul.f32 %v2092, 1.442695
  %v2277 = vpow.pop %v2276
  %v2278 = vmul.f32 %v2093, 1.442695
  %v2279 = vpow.pop %v2278
  %v2280 = vmul.f32 %v2094, 1.442695
  %v2281 = vpow.pop %v2280
  %v2282 = vmul.f32 %v2095, 1.442695
  %v2283 = vpow.pop %v2282
  %v2284 = vmul.f32 %v2096, 1.442695
  %v2285 = vpow.pop %v2284
  %v2286 = vmul.f32 %v2097, 1.442695
  %v2287 = vpow.pop %v2286
  %v2288 = vmul.f32 %v2098, 1.442695
  %v2289 = vpow.pop %v2288
  %v2290 = vmul.f32 %v2099, 1.442695
  %v2291 = vpow.pop %v2290
  %v2292 = vmul.f32 %v2100, 1.442695
  %v2293 = vpow.pop %v2292
  %v2294 = vmul.f32 %v2101, 1.442695
  %v2295 = vpow.pop %v2294
  %v2296 = vmul.f32 %v2102, 1.442695
  %v2297 = vpow.pop %v2296
  %v2298 = vmul.f32 %v2103, 1.442695
  %v2299 = vpow.pop %v2298
  %v2300 = vmul.f32 %v2104, 1.442695
  %v2301 = vpow.pop %v2300
  %v2302 = vmul.f32 %v2105, 1.442695
  %v2303 = vpow.pop %v2302
  %v2304 = vmul.f32 %v2106, 1.442695
  %v2305 = vpow.pop %v2304
  %v2306 = vmul.f32 %v2107, 1.442695
  %v2307 = vpow.pop %v2306
  %v2308 = vmul.f32 %v2108, 1.442695
  %v2309 = vpow.pop %v2308
  %v2310 = vmul.f32 %v2109, 1.442695
  %v2311 = vpow.pop %v2310
  %v2312 = vmul.f32 %v2110, 1.442695
  %v2313 = vpow.pop %v2312
  %v2314 = vmul.f32 %v2111, 1.442695
  %v2315 = vpow.pop %v2314
  %v2316 = vmul.f32 %v2112, 1.442695
  %v2317 = vpow.pop %v2316
  %v2318 = vmul.f32 %v2113, 1.442695
  %v2319 = vpow.pop %v2318
  %v2320 = vmul.f32 %v2114, 1.442695
  %v2321 = vpow.pop %v2320
  %v2322 = vmul.f32 %v2115, 1.442695
  %v2323 = vpow.pop %v2322
  %v2324 = vmul.f32 %v2116, 1.442695
  %v2325 = vpow.pop %v2324
  %v2326 = vmul.f32 %v2117, 1.442695
  %v2327 = vpow.pop %v2326
  %v2328 = vmul.f32 %v2118, 1.442695
  %v2329 = vpow.pop %v2328
  %v2330 = vmul.f32 %v2119, 1.442695
  %v2331 = vpow.pop %v2330
  %v2332 = vmul.f32 %v2120, 1.442695
  %v2333 = vpow.pop %v2332
  %v2334 = vmul.f32 %v2121, 1.442695
  %v2335 = vpow.pop %v2334
  %v2336 = vmul.f32 %v2122, 1.442695
  %v2337 = vpow.pop %v2336
  %v2338 = vmul.f32 %v2123, 1.442695
  %v2339 = vpow.pop %v2338
  %v2340 = vmul.f32 %v2124, 1.442695
  %v2341 = vpow.pop %v2340
  %v2342 = vmul.f32 %v2125, 1.442695
  %v2343 = vpow.pop %v2342
  %v2344 = vmul.f32 %v2126, 1.442695
  %v2345 = vpow.pop %v2344
  %v2346 = vmul.f32 %v2127, 1.442695
  %v2347 = vpow.pop %v2346
  %v2348 = vmul.f32 %v2128, 1.442695
  %v2349 = vpow.pop %v2348
  %v2350 = vmul.f32 %v2129, 1.442695
  %v2351 = vpow.pop %v2350
  %v2352 = vmul.f32 %v2130, 1.442695
  %v2353 = vpow.pop %v2352
  %v2354 = vmul.f32 %v2131, 1.442695
  %v2355 = vpow.pop %v2354
  %v2356 = vmul.f32 %v2132, 1.442695
  %v2357 = vpow.pop %v2356
  %v2358 = vmul.f32 %v2133, 1.442695
  %v2359 = vpow.pop %v2358
  %v2360 = vmul.f32 %v2134, 1.442695
  %v2361 = vpow.pop %v2360
  %v2362 = vmul.f32 %v2135, 1.442695
  %v2363 = vpow.pop %v2362
  %v2364 = vmul.f32 %v2136, 1.442695
  %v2365 = vpow.pop %v2364
  %v2366 = vmul.f32 %v2137, 1.442695
  %v2367 = vpow.pop %v2366
  %v2368 = vmul.f32 %v2138, 1.442695
  %v2369 = vpow.pop %v2368
  %v2370 = vmul.f32 %v2139, 1.442695
  %v2371 = vpow.pop %v2370
  %v2372 = vmul.f32 %v2140, 1.442695
  %v2373 = vpow.pop %v2372
  %v2374 = vmul.f32 %v2141, 1.442695
  %v2375 = vpow.pop %v2374
  %v2376 = vmul.f32 %v2142, 1.442695
  %v2377 = vpow.pop %v2376
  %v2378 = vmul.f32 %v2143, 1.442695
  %v2379 = vpow.pop %v2378
  %v2380 = vmul.f32 %v2144, 1.442695
  %v2381 = vpow.pop %v2380
  %v2382 = vmul.f32 %v2145, 1.442695
  %v2383 = vpow.pop %v2382
  %v2384 = vmul.f32 %v2146, 1.442695
  %v2385 = vpow.pop %v2384
  %v2386 = vmul.f32 %v2147, 1.442695
  %v2387 = vpow.pop %v2386
  %v2388 = vmul.f32 %v2148, 1.442695
  %v2389 = vpow.pop %v2388
  %v2390 = vmul.f32 %v2149, 1.442695
  %v2391 = vpow.pop %v2390
  %v2392 = vmul.f32 %v2150, 1.442695
  %v2393 = vpow.pop %v2392
  %v2394 = vmul.f32 %v2151, 1.442695
  %v2395 = vpow.pop %v2394
  %v2396 = vmul.f32 %v2152, 1.442695
  %v2397 = vpow.pop %v2396
  %v2398 = vmul.f32 %v2153, 1.442695
  %v2399 = vpow.pop %v2398
  %v2400 = vmul.f32 %v2154, 1.442695
  %v2401 = vpow.pop %v2400
  %v2402 = vmul.f32 %v2155, 1.442695
  %v2403 = vpow.pop %v2402
  %v2404 = vmul.f32 %v2156, 1.442695
  %v2405 = vpow.pop %v2404
  %v2406 = vmul.f32 %v2157, 1.442695
  %v2407 = vpow.pop %v2406
  %v2408 = vmul.f32 %v2158, 1.442695
  %v2409 = vpow.pop %v2408
  %v2410 = vmul.f32 %v2159, 1.442695
  %v2411 = vpow.pop %v2410
  %v2412 = vmul.f32 %v2160, 1.442695
  %v2413 = vpow.pop %v2412
  %v2414 = vmul.f32 %v2161, 1.442695
  %v2415 = vpow.pop %v2414
  %v2416 = vmul.f32 %v2162, 1.442695
  %v2417 = vpow.pop %v2416
  %v2418 = vmul.f32 %v2163, 1.442695
  %v2419 = vpow.pop %v2418
  %v2420 = vadd.f32 %v2165, 1.0
  %v2421 = vadd.f32 %v2167, 1.0
  %v2422 = vadd.f32 %v2169, 1.0
  %v2423 = vadd.f32 %v2171, 1.0
  %v2424 = vadd.f32 %v2173, 1.0
  %v2425 = vadd.f32 %v2175, 1.0
  %v2426 = vadd.f32 %v2177, 1.0
  %v2427 = vadd.f32 %v2179, 1.0
  %v2428 = vadd.f32 %v2181, 1.0
  %v2429 = vadd.f32 %v2183, 1.0
  %v2430 = vadd.f32 %v2185, 1.0
  %v2431 = vadd.f32 %v2187, 1.0
  %v2432 = vadd.f32 %v2189, 1.0
  %v2433 = vadd.f32 %v2191, 1.0
  %v2434 = vadd.f32 %v2193, 1.0
  %v2435 = vadd.f32 %v2195, 1.0
  %v2436 = vadd.f32 %v2197, 1.0
  %v2437 = vadd.f32 %v2199, 1.0
  %v2438 = vadd.f32 %v2201, 1.0
  %v2439 = vadd.f32 %v2203, 1.0
  %v2440 = vadd.f32 %v2205, 1.0
  %v2441 = vadd.f32 %v2207, 1.0
  %v2442 = vadd.f32 %v2209, 1.0
  %v2443 = vadd.f32 %v2211, 1.0
  %v2444 = vadd.f32 %v2213, 1.0
  %v2445 = vadd.f32 %v2215, 1.0
  %v2446 = vadd.f32 %v2217, 1.0
  %v2447 = vadd.f32 %v2219, 1.0
  %v2448 = vadd.f32 %v2221, 1.0
  %v2449 = vadd.f32 %v2223, 1.0
  %v2450 = vadd.f32 %v2225, 1.0
  %v2451 = vadd.f32 %v2227, 1.0
  %v2452 = vadd.f32 %v2229, 1.0
  %v2453 = vadd.f32 %v2231, 1.0
  %v2454 = vadd.f32 %v2233, 1.0
  %v2455 = vadd.f32 %v2235, 1.0
  %v2456 = vadd.f32 %v2237, 1.0
  %v2457 = vadd.f32 %v2239, 1.0
  %v2458 = vadd.f32 %v2241, 1.0
  %v2459 = vadd.f32 %v2243, 1.0
  %v2460 = vadd.f32 %v2245, 1.0
  %v2461 = vadd.f32 %v2247, 1.0
  %v2462 = vadd.f32 %v2249, 1.0
  %v2463 = vadd.f32 %v2251, 1.0
  %v2464 = vadd.f32 %v2253, 1.0
  %v2465 = vadd.f32 %v2255, 1.0
  %v2466 = vadd.f32 %v2257, 1.0
  %v2467 = vadd.f32 %v2259, 1.0
  %v2468 = vadd.f32 %v2261, 1.0
  %v2469 = vadd.f32 %v2263, 1.0
  %v2470 = vadd.f32 %v2265, 1.0
  %v2471 = vadd.f32 %v2267, 1.0
  %v2472 = vadd.f32 %v2269, 1.0
  %v2473 = vadd.f32 %v2271, 1.0
  %v2474 = vadd.f32 %v2273, 1.0
  %v2475 = vadd.f32 %v2275, 1.0
  %v2476 = vadd.f32 %v2277, 1.0
  %v2477 = vadd.f32 %v2279, 1.0
  %v2478 = vadd.f32 %v2281, 1.0
  %v2479 = vadd.f32 %v2283, 1.0
  %v2480 = vadd.f32 %v2285, 1.0
  %v2481 = vadd.f32 %v2287, 1.0
  %v2482 = vadd.f32 %v2289, 1.0
  %v2483 = vadd.f32 %v2291, 1.0
  %v2484 = vadd.f32 %v2293, 1.0
  %v2485 = vadd.f32 %v2295, 1.0
  %v2486 = vadd.f32 %v2297, 1.0
  %v2487 = vadd.f32 %v2299, 1.0
  %v2488 = vadd.f32 %v2301, 1.0
  %v2489 = vadd.f32 %v2303, 1.0
  %v2490 = vadd.f32 %v2305, 1.0
  %v2491 = vadd.f32 %v2307, 1.0
  %v2492 = vadd.f32 %v2309, 1.0
  %v2493 = vadd.f32 %v2311, 1.0
  %v2494 = vadd.f32 %v2313, 1.0
  %v2495 = vadd.f32 %v2315, 1.0
  %v2496 = vadd.f32 %v2317, 1.0
  %v2497 = vadd.f32 %v2319, 1.0
  %v2498 = vadd.f32 %v2321, 1.0
  %v2499 = vadd.f32 %v2323, 1.0
  %v2500 = vadd.f32 %v2325, 1.0
  %v2501 = vadd.f32 %v2327, 1.0
  %v2502 = vadd.f32 %v2329, 1.0
  %v2503 = vadd.f32 %v2331, 1.0
  %v2504 = vadd.f32 %v2333, 1.0
  %v2505 = vadd.f32 %v2335, 1.0
  %v2506 = vadd.f32 %v2337, 1.0
  %v2507 = vadd.f32 %v2339, 1.0
  %v2508 = vadd.f32 %v2341, 1.0
  %v2509 = vadd.f32 %v2343, 1.0
  %v2510 = vadd.f32 %v2345, 1.0
  %v2511 = vadd.f32 %v2347, 1.0
  %v2512 = vadd.f32 %v2349, 1.0
  %v2513 = vadd.f32 %v2351, 1.0
  %v2514 = vadd.f32 %v2353, 1.0
  %v2515 = vadd.f32 %v2355, 1.0
  %v2516 = vadd.f32 %v2357, 1.0
  %v2517 = vadd.f32 %v2359, 1.0
  %v2518 = vadd.f32 %v2361, 1.0
  %v2519 = vadd.f32 %v2363, 1.0
  %v2520 = vadd.f32 %v2365, 1.0
  %v2521 = vadd.f32 %v2367, 1.0
  %v2522 = vadd.f32 %v2369, 1.0
  %v2523 = vadd.f32 %v2371, 1.0
  %v2524 = vadd.f32 %v2373, 1.0
  %v2525 = vadd.f32 %v2375, 1.0
  %v2526 = vadd.f32 %v2377, 1.0
  %v2527 = vadd.f32 %v2379, 1.0
  %v2528 = vadd.f32 %v2381, 1.0
  %v2529 = vadd.f32 %v2383, 1.0
  %v2530 = vadd.f32 %v2385, 1.0
  %v2531 = vadd.f32 %v2387, 1.0
  %v2532 = vadd.f32 %v2389, 1.0
  %v2533 = vadd.f32 %v2391, 1.0
  %v2534 = vadd.f32 %v2393, 1.0
  %v2535 = vadd.f32 %v2395, 1.0
  %v2536 = vadd.f32 %v2397, 1.0
  %v2537 = vadd.f32 %v2399, 1.0
  %v2538 = vadd.f32 %v2401, 1.0
  %v2539 = vadd.f32 %v2403, 1.0
  %v2540 = vadd.f32 %v2405, 1.0
  %v2541 = vadd.f32 %v2407, 1.0
  %v2542 = vadd.f32 %v2409, 1.0
  %v2543 = vadd.f32 %v2411, 1.0
  %v2544 = vadd.f32 %v2413, 1.0
  %v2545 = vadd.f32 %v2415, 1.0
  %v2546 = vadd.f32 %v2417, 1.0
  %v2547 = vadd.f32 %v2419, 1.0
  %v2548 = vrcp.pop %v2420
  %v2549 = vmul.f32 1.0, %v2548
  %v2550 = vrcp.pop %v2421
  %v2551 = vmul.f32 1.0, %v2550
  %v2552 = vrcp.pop %v2422
  %v2553 = vmul.f32 1.0, %v2552
  %v2554 = vrcp.pop %v2423
  %v2555 = vmul.f32 1.0, %v2554
  %v2556 = vrcp.pop %v2424
  %v2557 = vmul.f32 1.0, %v2556
  %v2558 = vrcp.pop %v2425
  %v2559 = vmul.f32 1.0, %v2558
  %v2560 = vrcp.pop %v2426
  %v2561 = vmul.f32 1.0, %v2560
  %v2562 = vrcp.pop %v2427
  %v2563 = vmul.f32 1.0, %v2562
  %v2564 = vrcp.pop %v2428
  %v2565 = vmul.f32 1.0, %v2564
  %v2566 = vrcp.pop %v2429
  %v2567 = vmul.f32 1.0, %v2566
  %v2568 = vrcp.pop %v2430
  %v2569 = vmul.f32 1.0, %v2568
  %v2570 = vrcp.pop %v2431
  %v2571 = vmul.f32 1.0, %v2570
  %v2572 = vrcp.pop %v2432
  %v2573 = vmul.f32 1.0, %v2572
  %v2574 = vrcp.pop %v2433
  %v2575 = vmul.f32 1.0, %v2574
  %v2576 = vrcp.pop %v2434
  %v2577 = vmul.f32 1.0, %v2576
  %v2578 = vrcp.pop %v2435
  %v2579 = vmul.f32 1.0, %v2578
  %v2580 = vrcp.pop %v2436
  %v2581 = vmul.f32 1.0, %v2580
  %v2582 = vrcp.pop %v2437
  %v2583 = vmul.f32 1.0, %v2582
  %v2584 = vrcp.pop %v2438
  %v2585 = vmul.f32 1.0, %v2584
  %v2586 = vrcp.pop %v2439
  %v2587 = vmul.f32 1.0, %v2586
  %v2588 = vrcp.pop %v2440
  %v2589 = vmul.f32 1.0, %v2588
  %v2590 = vrcp.pop %v2441
  %v2591 = vmul.f32 1.0, %v2590
  %v2592 = vrcp.pop %v2442
  %v2593 = vmul.f32 1.0, %v2592
  %v2594 = vrcp.pop %v2443
  %v2595 = vmul.f32 1.0, %v2594
  %v2596 = vrcp.pop %v2444
  %v2597 = vmul.f32 1.0, %v2596
  %v2598 = vrcp.pop %v2445
  %v2599 = vmul.f32 1.0, %v2598
  %v2600 = vrcp.pop %v2446
  %v2601 = vmul.f32 1.0, %v2600
  %v2602 = vrcp.pop %v2447
  %v2603 = vmul.f32 1.0, %v2602
  %v2604 = vrcp.pop %v2448
  %v2605 = vmul.f32 1.0, %v2604
  %v2606 = vrcp.pop %v2449
  %v2607 = vmul.f32 1.0, %v2606
  %v2608 = vrcp.pop %v2450
  %v2609 = vmul.f32 1.0, %v2608
  %v2610 = vrcp.pop %v2451
  %v2611 = vmul.f32 1.0, %v2610
  %v2612 = vrcp.pop %v2452
  %v2613 = vmul.f32 1.0, %v2612
  %v2614 = vrcp.pop %v2453
  %v2615 = vmul.f32 1.0, %v2614
  %v2616 = vrcp.pop %v2454
  %v2617 = vmul.f32 1.0, %v2616
  %v2618 = vrcp.pop %v2455
  %v2619 = vmul.f32 1.0, %v2618
  %v2620 = vrcp.pop %v2456
  %v2621 = vmul.f32 1.0, %v2620
  %v2622 = vrcp.pop %v2457
  %v2623 = vmul.f32 1.0, %v2622
  %v2624 = vrcp.pop %v2458
  %v2625 = vmul.f32 1.0, %v2624
  %v2626 = vrcp.pop %v2459
  %v2627 = vmul.f32 1.0, %v2626
  %v2628 = vrcp.pop %v2460
  %v2629 = vmul.f32 1.0, %v2628
  %v2630 = vrcp.pop %v2461
  %v2631 = vmul.f32 1.0, %v2630
  %v2632 = vrcp.pop %v2462
  %v2633 = vmul.f32 1.0, %v2632
  %v2634 = vrcp.pop %v2463
  %v2635 = vmul.f32 1.0, %v2634
  %v2636 = vrcp.pop %v2464
  %v2637 = vmul.f32 1.0, %v2636
  %v2638 = vrcp.pop %v2465
  %v2639 = vmul.f32 1.0, %v2638
  %v2640 = vrcp.pop %v2466
  %v2641 = vmul.f32 1.0, %v2640
  %v2642 = vrcp.pop %v2467
  %v2643 = vmul.f32 1.0, %v2642
  %v2644 = vrcp.pop %v2468
  %v2645 = vmul.f32 1.0, %v2644
  %v2646 = vrcp.pop %v2469
  %v2647 = vmul.f32 1.0, %v2646
  %v2648 = vrcp.pop %v2470
  %v2649 = vmul.f32 1.0, %v2648
  %v2650 = vrcp.pop %v2471
  %v2651 = vmul.f32 1.0, %v2650
  %v2652 = vrcp.pop %v2472
  %v2653 = vmul.f32 1.0, %v2652
  %v2654 = vrcp.pop %v2473
  %v2655 = vmul.f32 1.0, %v2654
  %v2656 = vrcp.pop %v2474
  %v2657 = vmul.f32 1.0, %v2656
  %v2658 = vrcp.pop %v2475
  %v2659 = vmul.f32 1.0, %v2658
  %v2660 = vrcp.pop %v2476
  %v2661 = vmul.f32 1.0, %v2660
  %v2662 = vrcp.pop %v2477
  %v2663 = vmul.f32 1.0, %v2662
  %v2664 = vrcp.pop %v2478
  %v2665 = vmul.f32 1.0, %v2664
  %v2666 = vrcp.pop %v2479
  %v2667 = vmul.f32 1.0, %v2666
  %v2668 = vrcp.pop %v2480
  %v2669 = vmul.f32 1.0, %v2668
  %v2670 = vrcp.pop %v2481
  %v2671 = vmul.f32 1.0, %v2670
  %v2672 = vrcp.pop %v2482
  %v2673 = vmul.f32 1.0, %v2672
  %v2674 = vrcp.pop %v2483
  %v2675 = vmul.f32 1.0, %v2674
  %v2676 = vrcp.pop %v2484
  %v2677 = vmul.f32 1.0, %v2676
  %v2678 = vrcp.pop %v2485
  %v2679 = vmul.f32 1.0, %v2678
  %v2680 = vrcp.pop %v2486
  %v2681 = vmul.f32 1.0, %v2680
  %v2682 = vrcp.pop %v2487
  %v2683 = vmul.f32 1.0, %v2682
  %v2684 = vrcp.pop %v2488
  %v2685 = vmul.f32 1.0, %v2684
  %v2686 = vrcp.pop %v2489
  %v2687 = vmul.f32 1.0, %v2686
  %v2688 = vrcp.pop %v2490
  %v2689 = vmul.f32 1.0, %v2688
  %v2690 = vrcp.pop %v2491
  %v2691 = vmul.f32 1.0, %v2690
  %v2692 = vrcp.pop %v2492
  %v2693 = vmul.f32 1.0, %v2692
  %v2694 = vrcp.pop %v2493
  %v2695 = vmul.f32 1.0, %v2694
  %v2696 = vrcp.pop %v2494
  %v2697 = vmul.f32 1.0, %v2696
  %v2698 = vrcp.pop %v2495
  %v2699 = vmul.f32 1.0, %v2698
  %v2700 = vrcp.pop %v2496
  %v2701 = vmul.f32 1.0, %v2700
  %v2702 = vrcp.pop %v2497
  %v2703 = vmul.f32 1.0, %v2702
  %v2704 = vrcp.pop %v2498
  %v2705 = vmul.f32 1.0, %v2704
  %v2706 = vrcp.pop %v2499
  %v2707 = vmul.f32 1.0, %v2706
  %v2708 = vrcp.pop %v2500
  %v2709 = vmul.f32 1.0, %v2708
  %v2710 = vrcp.pop %v2501
  %v2711 = vmul.f32 1.0, %v2710
  %v2712 = vrcp.pop %v2502
  %v2713 = vmul.f32 1.0, %v2712
  %v2714 = vrcp.pop %v2503
  %v2715 = vmul.f32 1.0, %v2714
  %v2716 = vrcp.pop %v2504
  %v2717 = vmul.f32 1.0, %v2716
  %v2718 = vrcp.pop %v2505
  %v2719 = vmul.f32 1.0, %v2718
  %v2720 = vrcp.pop %v2506
  %v2721 = vmul.f32 1.0, %v2720
  %v2722 = vrcp.pop %v2507
  %v2723 = vmul.f32 1.0, %v2722
  %v2724 = vrcp.pop %v2508
  %v2725 = vmul.f32 1.0, %v2724
  %v2726 = vrcp.pop %v2509
  %v2727 = vmul.f32 1.0, %v2726
  %v2728 = vrcp.pop %v2510
  %v2729 = vmul.f32 1.0, %v2728
  %v2730 = vrcp.pop %v2511
  %v2731 = vmul.f32 1.0, %v2730
  %v2732 = vrcp.pop %v2512
  %v2733 = vmul.f32 1.0, %v2732
  %v2734 = vrcp.pop %v2513
  %v2735 = vmul.f32 1.0, %v2734
  %v2736 = vrcp.pop %v2514
  %v2737 = vmul.f32 1.0, %v2736
  %v2738 = vrcp.pop %v2515
  %v2739 = vmul.f32 1.0, %v2738
  %v2740 = vrcp.pop %v2516
  %v2741 = vmul.f32 1.0, %v2740
  %v2742 = vrcp.pop %v2517
  %v2743 = vmul.f32 1.0, %v2742
  %v2744 = vrcp.pop %v2518
  %v2745 = vmul.f32 1.0, %v2744
  %v2746 = vrcp.pop %v2519
  %v2747 = vmul.f32 1.0, %v2746
  %v2748 = vrcp.pop %v2520
  %v2749 = vmul.f32 1.0, %v2748
  %v2750 = vrcp.pop %v2521
  %v2751 = vmul.f32 1.0, %v2750
  %v2752 = vrcp.pop %v2522
  %v2753 = vmul.f32 1.0, %v2752
  %v2754 = vrcp.pop %v2523
  %v2755 = vmul.f32 1.0, %v2754
  %v2756 = vrcp.pop %v2524
  %v2757 = vmul.f32 1.0, %v2756
  %v2758 = vrcp.pop %v2525
  %v2759 = vmul.f32 1.0, %v2758
  %v2760 = vrcp.pop %v2526
  %v2761 = vmul.f32 1.0, %v2760
  %v2762 = vrcp.pop %v2527
  %v2763 = vmul.f32 1.0, %v2762
  %v2764 = vrcp.pop %v2528
  %v2765 = vmul.f32 1.0, %v2764
  %v2766 = vrcp.pop %v2529
  %v2767 = vmul.f32 1.0, %v2766
  %v2768 = vrcp.pop %v2530
  %v2769 = vmul.f32 1.0, %v2768
  %v2770 = vrcp.pop %v2531
  %v2771 = vmul.f32 1.0, %v2770
  %v2772 = vrcp.pop %v2532
  %v2773 = vmul.f32 1.0, %v2772
  %v2774 = vrcp.pop %v2533
  %v2775 = vmul.f32 1.0, %v2774
  %v2776 = vrcp.pop %v2534
  %v2777 = vmul.f32 1.0, %v2776
  %v2778 = vrcp.pop %v2535
  %v2779 = vmul.f32 1.0, %v2778
  %v2780 = vrcp.pop %v2536
  %v2781 = vmul.f32 1.0, %v2780
  %v2782 = vrcp.pop %v2537
  %v2783 = vmul.f32 1.0, %v2782
  %v2784 = vrcp.pop %v2538
  %v2785 = vmul.f32 1.0, %v2784
  %v2786 = vrcp.pop %v2539
  %v2787 = vmul.f32 1.0, %v2786
  %v2788 = vrcp.pop %v2540
  %v2789 = vmul.f32 1.0, %v2788
  %v2790 = vrcp.pop %v2541
  %v2791 = vmul.f32 1.0, %v2790
  %v2792 = vrcp.pop %v2542
  %v2793 = vmul.f32 1.0, %v2792
  %v2794 = vrcp.pop %v2543
  %v2795 = vmul.f32 1.0, %v2794
  %v2796 = vrcp.pop %v2544
  %v2797 = vmul.f32 1.0, %v2796
  %v2798 = vrcp.pop %v2545
  %v2799 = vmul.f32 1.0, %v2798
  %v2800 = vrcp.pop %v2546
  %v2801 = vmul.f32 1.0, %v2800
  %v2802 = vrcp.pop %v2547
  %v2803 = vmul.f32 1.0, %v2802
  %vm2804 = vcmask 7168
  %2805 = vst.msk [vmem:[%s5] sm:$0xff] %vm2804, %v2549
  %2806 = vst.msk [vmem:[%s5 + $0x8] sm:$0xff] %vm2804, %v2551
  %2807 = vst.msk [vmem:[%s5 + $0x10] sm:$0xff] %vm2804, %v2553
  %2808 = vst.msk [vmem:[%s5 + $0x18] sm:$0xff] %vm2804, %v2555
  %2809 = vst.msk [vmem:[%s5 + $0x20] sm:$0xff] %vm2804, %v2557
  %2810 = vst.msk [vmem:[%s5 + $0x28] sm:$0xff] %vm2804, %v2559
  %2811 = vst.msk [vmem:[%s5 + $0x30] sm:$0xff] %vm2804, %v2561
  %2812 = vst.msk [vmem:[%s5 + $0x38] sm:$0xff] %vm2804, %v2563
  %2813 = vst.msk [vmem:[%s5 + $0x40] sm:$0xff] %vm2804, %v2565
  %2814 = vst.msk [vmem:[%s5 + $0x48] sm:$0xff] %vm2804, %v2567
  %2815 = vst.msk [vmem:[%s5 + $0x50] sm:$0xff] %vm2804, %v2569
  %2816 = vst.msk [vmem:[%s5 + $0x58] sm:$0xff] %vm2804, %v2571
  %2817 = vst.msk [vmem:[%s5 + $0x60] sm:$0xff] %vm2804, %v2573
  %2818 = vst.msk [vmem:[%s5 + $0x68] sm:$0xff] %vm2804, %v2575
  %2819 = vst.msk [vmem:[%s5 + $0x70] sm:$0xff] %vm2804, %v2577
  %2820 = vst.msk [vmem:[%s5 + $0x78] sm:$0xff] %vm2804, %v2579
  %2821 = vst.msk [vmem:[%s5 + $0x80] sm:$0xff] %vm2804, %v2581
  %2822 = vst.msk [vmem:[%s5 + $0x88] sm:$0xff] %vm2804, %v2583
  %2823 = vst.msk [vmem:[%s5 + $0x90] sm:$0xff] %vm2804, %v2585
  %2824 = vst.msk [vmem:[%s5 + $0x98] sm:$0xff] %vm2804, %v2587
  %2825 = vst.msk [vmem:[%s5 + $0xa0] sm:$0xff] %vm2804, %v2589
  %2826 = vst.msk [vmem:[%s5 + $0xa8] sm:$0xff] %vm2804, %v2591
  %2827 = vst.msk [vmem:[%s5 + $0xb0] sm:$0xff] %vm2804, %v2593
  %2828 = vst.msk [vmem:[%s5 + $0xb8] sm:$0xff] %vm2804, %v2595
  %2829 = vst.msk [vmem:[%s5 + $0xc0] sm:$0xff] %vm2804, %v2597
  %2830 = vst.msk [vmem:[%s5 + $0xc8] sm:$0xff] %vm2804, %v2599
  %2831 = vst.msk [vmem:[%s5 + $0xd0] sm:$0xff] %vm2804, %v2601
  %2832 = vst.msk [vmem:[%s5 + $0xd8] sm:$0xff] %vm2804, %v2603
  %2833 = vst.msk [vmem:[%s5 + $0xe0] sm:$0xff] %vm2804, %v2605
  %2834 = vst.msk [vmem:[%s5 + $0xe8] sm:$0xff] %vm2804, %v2607
  %2835 = vst.msk [vmem:[%s5 + $0xf0] sm:$0xff] %vm2804, %v2609
  %2836 = vst.msk [vmem:[%s5 + $0xf8] sm:$0xff] %vm2804, %v2611
  %2837 = vst.msk [vmem:[%s5 + $0x100] sm:$0xff] %vm2804, %v2613
  %2838 = vst.msk [vmem:[%s5 + $0x108] sm:$0xff] %vm2804, %v2615
  %2839 = vst.msk [vmem:[%s5 + $0x110] sm:$0xff] %vm2804, %v2617
  %2840 = vst.msk [vmem:[%s5 + $0x118] sm:$0xff] %vm2804, %v2619
  %2841 = vst.msk [vmem:[%s5 + $0x120] sm:$0xff] %vm2804, %v2621
  %2842 = vst.msk [vmem:[%s5 + $0x128] sm:$0xff] %vm2804, %v2623
  %2843 = vst.msk [vmem:[%s5 + $0x130] sm:$0xff] %vm2804, %v2625
  %2844 = vst.msk [vmem:[%s5 + $0x138] sm:$0xff] %vm2804, %v2627
  %2845 = vst.msk [vmem:[%s5 + $0x140] sm:$0xff] %vm2804, %v2629
  %2846 = vst.msk [vmem:[%s5 + $0x148] sm:$0xff] %vm2804, %v2631
  %2847 = vst.msk [vmem:[%s5 + $0x150] sm:$0xff] %vm2804, %v2633
  %2848 = vst.msk [vmem:[%s5 + $0x158] sm:$0xff] %vm2804, %v2635
  %2849 = vst.msk [vmem:[%s5 + $0x160] sm:$0xff] %vm2804, %v2637
  %2850 = vst.msk [vmem:[%s5 + $0x168] sm:$0xff] %vm2804, %v2639
  %2851 = vst.msk [vmem:[%s5 + $0x170] sm:$0xff] %vm2804, %v2641
  %2852 = vst.msk [vmem:[%s5 + $0x178] sm:$0xff] %vm2804, %v2643
  %2853 = vst.msk [vmem:[%s5 + $0x180] sm:$0xff] %vm2804, %v2645
  %2854 = vst.msk [vmem:[%s5 + $0x188] sm:$0xff] %vm2804, %v2647
  %2855 = vst.msk [vmem:[%s5 + $0x190] sm:$0xff] %vm2804, %v2649
  %2856 = vst.msk [vmem:[%s5 + $0x198] sm:$0xff] %vm2804, %v2651
  %2857 = vst.msk [vmem:[%s5 + $0x1a0] sm:$0xff] %vm2804, %v2653
  %2858 = vst.msk [vmem:[%s5 + $0x1a8] sm:$0xff] %vm2804, %v2655
  %2859 = vst.msk [vmem:[%s5 + $0x1b0] sm:$0xff] %vm2804, %v2657
  %2860 = vst.msk [vmem:[%s5 + $0x1b8] sm:$0xff] %vm2804, %v2659
  %2861 = vst.msk [vmem:[%s5 + $0x1c0] sm:$0xff] %vm2804, %v2661
  %2862 = vst.msk [vmem:[%s5 + $0x1c8] sm:$0xff] %vm2804, %v2663
  %2863 = vst.msk [vmem:[%s5 + $0x1d0] sm:$0xff] %vm2804, %v2665
  %2864 = vst.msk [vmem:[%s5 + $0x1d8] sm:$0xff] %vm2804, %v2667
  %2865 = vst.msk [vmem:[%s5 + $0x1e0] sm:$0xff] %vm2804, %v2669
  %2866 = vst.msk [vmem:[%s5 + $0x1e8] sm:$0xff] %vm2804, %v2671
  %2867 = vst.msk [vmem:[%s5 + $0x1f0] sm:$0xff] %vm2804, %v2673
  %2868 = vst.msk [vmem:[%s5 + $0x1f8] sm:$0xff] %vm2804, %v2675
  %2869 = vst.msk [vmem:[%s5 + $0x200] sm:$0xff] %vm2804, %v2677
  %2870 = vst.msk [vmem:[%s5 + $0x208] sm:$0xff] %vm2804, %v2679
  %2871 = vst.msk [vmem:[%s5 + $0x210] sm:$0xff] %vm2804, %v2681
  %2872 = vst.msk [vmem:[%s5 + $0x218] sm:$0xff] %vm2804, %v2683
  %2873 = vst.msk [vmem:[%s5 + $0x220] sm:$0xff] %vm2804, %v2685
  %2874 = vst.msk [vmem:[%s5 + $0x228] sm:$0xff] %vm2804, %v2687
  %2875 = vst.msk [vmem:[%s5 + $0x230] sm:$0xff] %vm2804, %v2689
  %2876 = vst.msk [vmem:[%s5 + $0x238] sm:$0xff] %vm2804, %v2691
  %2877 = vst.msk [vmem:[%s5 + $0x240] sm:$0xff] %vm2804, %v2693
  %2878 = vst.msk [vmem:[%s5 + $0x248] sm:$0xff] %vm2804, %v2695
  %2879 = vst.msk [vmem:[%s5 + $0x250] sm:$0xff] %vm2804, %v2697
  %2880 = vst.msk [vmem:[%s5 + $0x258] sm:$0xff] %vm2804, %v2699
  %2881 = vst.msk [vmem:[%s5 + $0x260] sm:$0xff] %vm2804, %v2701
  %2882 = vst.msk [vmem:[%s5 + $0x268] sm:$0xff] %vm2804, %v2703
  %2883 = vst.msk [vmem:[%s5 + $0x270] sm:$0xff] %vm2804, %v2705
  %2884 = vst.msk [vmem:[%s5 + $0x278] sm:$0xff] %vm2804, %v2707
  %2885 = vst.msk [vmem:[%s5 + $0x280] sm:$0xff] %vm2804, %v2709
  %2886 = vst.msk [vmem:[%s5 + $0x288] sm:$0xff] %vm2804, %v2711
  %2887 = vst.msk [vmem:[%s5 + $0x290] sm:$0xff] %vm2804, %v2713
  %2888 = vst.msk [vmem:[%s5 + $0x298] sm:$0xff] %vm2804, %v2715
  %2889 = vst.msk [vmem:[%s5 + $0x2a0] sm:$0xff] %vm2804, %v2717
  %2890 = vst.msk [vmem:[%s5 + $0x2a8] sm:$0xff] %vm2804, %v2719
  %2891 = vst.msk [vmem:[%s5 + $0x2b0] sm:$0xff] %vm2804, %v2721
  %2892 = vst.msk [vmem:[%s5 + $0x2b8] sm:$0xff] %vm2804, %v2723
  %2893 = vst.msk [vmem:[%s5 + $0x2c0] sm:$0xff] %vm2804, %v2725
  %2894 = vst.msk [vmem:[%s5 + $0x2c8] sm:$0xff] %vm2804, %v2727
  %2895 = vst.msk [vmem:[%s5 + $0x2d0] sm:$0xff] %vm2804, %v2729
  %2896 = vst.msk [vmem:[%s5 + $0x2d8] sm:$0xff] %vm2804, %v2731
  %2897 = vst.msk [vmem:[%s5 + $0x2e0] sm:$0xff] %vm2804, %v2733
  %2898 = vst.msk [vmem:[%s5 + $0x2e8] sm:$0xff] %vm2804, %v2735
  %2899 = vst.msk [vmem:[%s5 + $0x2f0] sm:$0xff] %vm2804, %v2737
  %2900 = vst.msk [vmem:[%s5 + $0x2f8] sm:$0xff] %vm2804, %v2739
  %2901 = vst.msk [vmem:[%s5 + $0x300] sm:$0xff] %vm2804, %v2741
  %2902 = vst.msk [vmem:[%s5 + $0x308] sm:$0xff] %vm2804, %v2743
  %2903 = vst.msk [vmem:[%s5 + $0x310] sm:$0xff] %vm2804, %v2745
  %2904 = vst.msk [vmem:[%s5 + $0x318] sm:$0xff] %vm2804, %v2747
  %2905 = vst.msk [vmem:[%s5 + $0x320] sm:$0xff] %vm2804, %v2749
  %2906 = vst.msk [vmem:[%s5 + $0x328] sm:$0xff] %vm2804, %v2751
  %2907 = vst.msk [vmem:[%s5 + $0x330] sm:$0xff] %vm2804, %v2753
  %2908 = vst.msk [vmem:[%s5 + $0x338] sm:$0xff] %vm2804, %v2755
  %2909 = vst.msk [vmem:[%s5 + $0x340] sm:$0xff] %vm2804, %v2757
  %2910 = vst.msk [vmem:[%s5 + $0x348] sm:$0xff] %vm2804, %v2759
  %2911 = vst.msk [vmem:[%s5 + $0x350] sm:$0xff] %vm2804, %v2761
  %2912 = vst.msk [vmem:[%s5 + $0x358] sm:$0xff] %vm2804, %v2763
  %2913 = vst.msk [vmem:[%s5 + $0x360] sm:$0xff] %vm2804, %v2765
  %2914 = vst.msk [vmem:[%s5 + $0x368] sm:$0xff] %vm2804, %v2767
  %2915 = vst.msk [vmem:[%s5 + $0x370] sm:$0xff] %vm2804, %v2769
  %2916 = vst.msk [vmem:[%s5 + $0x378] sm:$0xff] %vm2804, %v2771
  %2917 = vst.msk [vmem:[%s5 + $0x380] sm:$0xff] %vm2804, %v2773
  %2918 = vst.msk [vmem:[%s5 + $0x388] sm:$0xff] %vm2804, %v2775
  %2919 = vst.msk [vmem:[%s5 + $0x390] sm:$0xff] %vm2804, %v2777
  %2920 = vst.msk [vmem:[%s5 + $0x398] sm:$0xff] %vm2804, %v2779
  %2921 = vst.msk [vmem:[%s5 + $0x3a0] sm:$0xff] %vm2804, %v2781
  %2922 = vst.msk [vmem:[%s5 + $0x3a8] sm:$0xff] %vm2804, %v2783
  %2923 = vst.msk [vmem:[%s5 + $0x3b0] sm:$0xff] %vm2804, %v2785
  %2924 = vst.msk [vmem:[%s5 + $0x3b8] sm:$0xff] %vm2804, %v2787
  %2925 = vst.msk [vmem:[%s5 + $0x3c0] sm:$0xff] %vm2804, %v2789
  %2926 = vst.msk [vmem:[%s5 + $0x3c8] sm:$0xff] %vm2804, %v2791
  %2927 = vst.msk [vmem:[%s5 + $0x3d0] sm:$0xff] %vm2804, %v2793
  %2928 = vst.msk [vmem:[%s5 + $0x3d8] sm:$0xff] %vm2804, %v2795
  %2929 = vst.msk [vmem:[%s5 + $0x3e0] sm:$0xff] %vm2804, %v2797
  %2930 = vst.msk [vmem:[%s5 + $0x3e8] sm:$0xff] %vm2804, %v2799
  %2931 = vst.msk [vmem:[%s5 + $0x3f0] sm:$0xff] %vm2804, %v2801
  %2932 = vst.msk [vmem:[%s5 + $0x3f8] sm:$0xff] %vm2804, %v2803
  // Predicated region
  $region22: #{tpu_custom_call.1} parent=0 // pred_check
    _
  $region23: #{tpu_custom_call.1} parent=0 // pred_check_branch
    %2934 = sbr.rel (0) target = $region25
  $region24: #{tpu_custom_call.1} parent=0 // pred_region
    _
  $region25: #{tpu_custom_call.1} parent=0 // pred_fallthru
    _
  // Predicated region
  $region26: #{tpu_custom_call.1} parent=0 // pred_check
    _
  $region27: #{tpu_custom_call.1} parent=0 // pred_check_branch
    %2936 = sbr.rel (0) target = $region29
  $region28: #{tpu_custom_call.1} parent=0 // pred_region
    _
  $region29: #{tpu_custom_call.1} parent=0 // pred_fallthru
    _

</llo_original>
